<compile_context>
chip_gen: v7x
topology: tpu7x:2x2x1
jax: 0.10.0
libtpu: 0.0.40
codegen_flags: <defaults>
</compile_context>

<pallas_src>
import functools

import jax
import jax.numpy as jnp
from jax.experimental import pallas as pl
from jax.experimental.pallas import tpu as pltpu

_LANE = 128
_VMEM_LIMIT = 32 * 1024 * 1024  # explicit scoped-VMEM budget (safe on v5e/v6e/v7x)


def _round_up(x, m):
    return (x + m - 1) // m * m


def _pick_row_tile(h, w, max_rows=2048):
    """Largest divisor TH of h with TH*w a multiple of 8 and <= max_rows."""
    for th in range(h, 0, -1):
        if h % th == 0 and (th * w) % 8 == 0 and th * w <= max_rows:
            return th
    return h


def _make_conv_kernel(W, Cin, KH, KW, TH, K_pad, Cout_pad):
    M_tile = TH * W
    K = KH * KW * Cin

    def kernel(x_ref, w_ref, y_ref, stat_ref):
        # x_ref:    (1, Hp, Wp, Cin)   full padded image, resident across the H-block axis
        # w_ref:    (K_pad, Cout_pad)  fused weight slab, resident across the whole grid
        # y_ref:    (M_tile, Cout_pad) conv output tile (lane dense)
        # stat_ref: (1, 2, Cout_pad)   per-tile [sum, sum-of-squares]
        j = pl.program_id(1)
        h0 = pl.multiple_of(j * TH, TH)
        window = x_ref[0, pl.ds(h0, TH + KH - 1), :, :]        # (TH+KH-1, Wp, Cin)

        # im2col over the VMEM tile -> one fused MXU contraction over KH*KW*Cin
        # (padded with zero columns to K_pad so the slab is lane dense).
        parts = []
        for kh in range(KH):
            for kw in range(KW):
                p = window[kh:kh + TH, kw:kw + W, :]           # (TH, W, Cin)
                parts.append(p.reshape(M_tile, Cin))
        if K_pad > K:
            parts.append(jnp.zeros((M_tile, K_pad - K), jnp.float32))
        slab = jnp.concatenate(parts, axis=-1)                 # (M_tile, K_pad)

        y = jnp.dot(slab, w_ref[...], preferred_element_type=jnp.float32)
        y_ref[...] = y

        s1 = jnp.sum(y, axis=0, keepdims=True)                 # (1, Cout_pad)
        s2 = jnp.sum(y * y, axis=0, keepdims=True)             # (1, Cout_pad)
        stat_ref[...] = jnp.concatenate([s1, s2], axis=0).reshape(1, 2, Cout_pad)

    return kernel


def _bn_relu_kernel(y_ref, scale_ref, shift_ref, o_ref):
    o_ref[...] = jnp.maximum(y_ref[...] * scale_ref[...] + shift_ref[...], 0.0)


@functools.partial(jax.jit, static_argnames=("kernel_size", "stride", "padding", "eps"))
def conv_bn_relu_pallas(x_nchw, weight_oihw, bias, gamma, beta,
                        kernel_size=3, stride=1, padding=1, eps=1e-5):
    # Conv bias is mathematically cancelled by the BN mean subtraction -> unused.
    del bias
    assert stride == 1, "this kernel implements the stride=1 configuration"

    N, Cin, H, W = x_nchw.shape
    Cout = weight_oihw.shape[0]
    KH = KW = kernel_size
    Hp, Wp = H + 2 * padding, W + 2 * padding
    NHW = N * H * W

    K = KH * KW * Cin
    K_pad = _round_up(K, _LANE)
    Cout_pad = _round_up(Cout, _LANE)

    TH = _pick_row_tile(H, W)
    n_hblk = H // TH
    M_tile = TH * W

    # ---- wrapper-side layout glue (NCHW -> padded NHWC; OIHW -> fused HWIO slab) ----
    # NOTE: if the surrounding model keeps activations in NHWC these transposes vanish.
    x_nhwc = jnp.transpose(x_nchw, (0, 2, 3, 1)).astype(jnp.float32)
    x_pad = jnp.pad(x_nhwc, ((0, 0), (padding, padding), (padding, padding), (0, 0)))

    w_hwio = jnp.transpose(weight_oihw, (2, 3, 1, 0)).reshape(K, Cout).astype(jnp.float32)
    w_slab = jnp.zeros((K_pad, Cout_pad), jnp.float32).at[:K, :Cout].set(w_hwio)

    conv_kernel = _make_conv_kernel(W, Cin, KH, KW, TH, K_pad, Cout_pad)

    cost1 = pl.CostEstimate(
        flops=2 * NHW * K_pad * Cout_pad,
        transcendentals=0,
        bytes_accessed=(x_pad.size + w_slab.size + NHW * Cout_pad + N * n_hblk * 2 * Cout_pad) * 4,
    )

    y_conv, stats = pl.pallas_call(
        conv_kernel,
        out_shape=(
            jax.ShapeDtypeStruct((NHW, Cout_pad), jnp.float32),
            jax.ShapeDtypeStruct((N * n_hblk, 2, Cout_pad), jnp.float32),
        ),
        grid=(N, n_hblk),
        in_specs=[
            pl.BlockSpec((1, Hp, Wp, Cin), lambda i, j: (i, 0, 0, 0)),   # resident over j
            pl.BlockSpec((K_pad, Cout_pad), lambda i, j: (0, 0)),        # resident weights
        ],
        out_specs=(
            pl.BlockSpec((M_tile, Cout_pad), lambda i, j: (i * n_hblk + j, 0)),
            pl.BlockSpec((1, 2, Cout_pad), lambda i, j: (i * n_hblk + j, 0, 0)),
        ),
        compiler_params=pltpu.CompilerParams(
            dimension_semantics=("parallel", "parallel"),
            vmem_limit_bytes=_VMEM_LIMIT,
        ),
        cost_estimate=cost1,
    )(x_pad, w_slab)

    # ---- BatchNorm batch statistics (tiny) and affine folding, in plain JAX ----
    tot = jnp.sum(stats, axis=0)                              # (2, Cout_pad)
    cnt = jnp.float32(NHW)
    mean = tot[0] / cnt
    # one-pass variance; f32 accumulation, clamp tiny negative cancellation residue
    var = jnp.maximum(tot[1] / cnt - mean * mean, 0.0)        # biased variance (PyTorch fwd)
    inv = jax.lax.rsqrt(var + jnp.float32(eps))
    gamma_p = jnp.zeros((Cout_pad,), jnp.float32).at[:Cout].set(gamma.astype(jnp.float32))
    beta_p = jnp.zeros((Cout_pad,), jnp.float32).at[:Cout].set(beta.astype(jnp.float32))
    scale = (gamma_p * inv).reshape(1, Cout_pad)
    shift = (beta_p - mean * gamma_p * inv).reshape(1, Cout_pad)

    # ---- pass 2: elementwise normalize + ReLU, lane-dense, tiled over rows ----
    TM2 = NHW
    for cand in (2048, 1024, 512, 256, 128, 64, 32, 16, 8):
        if NHW % cand == 0:
            TM2 = cand
            break

    out2d = pl.pallas_call(
        _bn_relu_kernel,
        out_shape=jax.ShapeDtypeStruct((NHW, Cout_pad), jnp.float32),
        grid=(NHW // TM2,),
        in_specs=[
            pl.BlockSpec((TM2, Cout_pad), lambda i: (i, 0)),
            pl.BlockSpec((1, Cout_pad), lambda i: (0, 0)),
            pl.BlockSpec((1, Cout_pad), lambda i: (0, 0)),
        ],
        out_specs=pl.BlockSpec((TM2, Cout_pad), lambda i: (i, 0)),
        compiler_params=pltpu.CompilerParams(
            dimension_semantics=("parallel",),
            vmem_limit_bytes=_VMEM_LIMIT,
        ),
        cost_estimate=pl.CostEstimate(
            flops=2 * NHW * Cout_pad, transcendentals=0,
            bytes_accessed=2 * NHW * Cout_pad * 4),
    )(y_conv, scale, shift)

    # (N*H*W, Cout_pad) -> NHWC -> NCHW (PyTorch layout), dropping channel padding.
    out = out2d.reshape(N, H, W, Cout_pad)[..., :Cout]
    return jnp.transpose(out, (0, 3, 1, 2))


def _reference(x_nchw, weight_oihw, bias, gamma, beta, padding=1, eps=1e-5):
    # plain-JAX reference: conv2d (with bias) + training-mode BN + ReLU
    y = jax.lax.conv_general_dilated(
        x_nchw, weight_oihw, window_strides=(1, 1),
        padding=((padding, padding), (padding, padding)),
        dimension_numbers=("NCHW", "OIHW", "NCHW"))
    y = y + bias[None, :, None, None]
    mean = jnp.mean(y, axis=(0, 2, 3), keepdims=True)
    var = jnp.mean((y - mean) ** 2, axis=(0, 2, 3), keepdims=True)
    y = (y - mean) * jax.lax.rsqrt(var + eps)
    y = y * gamma[None, :, None, None] + beta[None, :, None, None]
    return jnp.maximum(y, 0.0)


if __name__ == "__main__":
    key = jax.random.PRNGKey(0)
    k_x, k_w, k_b = jax.random.split(key, 3)

    N, Cin, Cout, H, W, K = 2, 4, 8, 16, 16, 3

    x = jax.random.normal(k_x, (N, Cin, H, W), dtype=jnp.float32)
    weight = jax.random.normal(k_w, (Cout, Cin, K, K), dtype=jnp.float32) * 0.1
    bias = jax.random.normal(k_b, (Cout,), dtype=jnp.float32) * 0.1
    gamma = jnp.ones((Cout,), dtype=jnp.float32)   # BatchNorm2d default init
    beta = jnp.zeros((Cout,), dtype=jnp.float32)

    out = conv_bn_relu_pallas(x, weight, bias, gamma, beta,
                              kernel_size=K, stride=1, padding=1)
    out = jax.block_until_ready(out)

    ref = _reference(x, weight, bias, gamma, beta, padding=1)
    assert out.shape == (N, Cout, H, W)
    assert jnp.allclose(out, ref, atol=1e-2, rtol=1e-2)

    print("KERNEL_OK")
</pallas_src>

<mosaic_0001>
module attributes {stable_mosaic.version = 11 : i64} {
  func.func @kernel(%arg0: i32, %arg1: i32, %arg2: memref<1x18x18x4xf32, #tpu.memory_space<vmem>>, %arg3: memref<128x128xf32, #tpu.memory_space<vmem>>, %arg4: memref<256x128xf32, #tpu.memory_space<vmem>>, %arg5: memref<1x2x128xf32, #tpu.memory_space<vmem>>) attributes {dimension_semantics = [#tpu.dimension_semantics<parallel>, #tpu.dimension_semantics<parallel>], iteration_bounds = array<i64: 2, 1>, scalar_prefetch = 0 : i64, scratch_operands = 0 : i64, tpu.core_type = #tpu.core_type<tc>, window_params = [{transform_indices = @transform_0, window_bounds = array<i64: 1, 18, 18, 4>}, {pipeline_mode = #tpu.pipeline_mode<synchronous>, transform_indices = @transform_1, window_bounds = array<i64: 128, 128>}, {transform_indices = @transform_2, window_bounds = array<i64: 256, 128>}, {transform_indices = @transform_3, window_bounds = array<i64: 1, 2, 128>}]} {
    %c16_i32 = arith.constant 16 : i32
    %0 = arith.muli %arg1, %c16_i32 : i32
    %1 = tpu.assume_multiple %0, 16 : i32
    %c0 = arith.constant 0 : index
    %2 = arith.index_cast %1 : i32 to index
    %c0_0 = arith.constant 0 : index
    %c0_1 = arith.constant 0 : index
    %3 = vector.load %arg2[%c0, %2, %c0_0, %c0_1] : memref<1x18x18x4xf32, #tpu.memory_space<vmem>>, vector<1x18x18x4xf32>
    %4 = vector.shape_cast %3 : vector<1x18x18x4xf32> to vector<18x18x4xf32>
    %5 = vector.extract_strided_slice %4 {offsets = [0, 0, 0], sizes = [16, 16, 4], strides = [1, 1, 1]} : vector<18x18x4xf32> to vector<16x16x4xf32>
    %6 = vector.shape_cast %5 : vector<16x16x4xf32> to vector<256x4xf32>
    %7 = vector.extract_strided_slice %4 {offsets = [0, 1, 0], sizes = [16, 16, 4], strides = [1, 1, 1]} : vector<18x18x4xf32> to vector<16x16x4xf32>
    %8 = vector.shape_cast %7 : vector<16x16x4xf32> to vector<256x4xf32>
    %9 = vector.extract_strided_slice %4 {offsets = [0, 2, 0], sizes = [16, 16, 4], strides = [1, 1, 1]} : vector<18x18x4xf32> to vector<16x16x4xf32>
    %10 = vector.shape_cast %9 : vector<16x16x4xf32> to vector<256x4xf32>
    %11 = vector.extract_strided_slice %4 {offsets = [1, 0, 0], sizes = [16, 16, 4], strides = [1, 1, 1]} : vector<18x18x4xf32> to vector<16x16x4xf32>
    %12 = vector.shape_cast %11 : vector<16x16x4xf32> to vector<256x4xf32>
    %13 = vector.extract_strided_slice %4 {offsets = [1, 1, 0], sizes = [16, 16, 4], strides = [1, 1, 1]} : vector<18x18x4xf32> to vector<16x16x4xf32>
    %14 = vector.shape_cast %13 : vector<16x16x4xf32> to vector<256x4xf32>
    %15 = vector.extract_strided_slice %4 {offsets = [1, 2, 0], sizes = [16, 16, 4], strides = [1, 1, 1]} : vector<18x18x4xf32> to vector<16x16x4xf32>
    %16 = vector.shape_cast %15 : vector<16x16x4xf32> to vector<256x4xf32>
    %17 = vector.extract_strided_slice %4 {offsets = [2, 0, 0], sizes = [16, 16, 4], strides = [1, 1, 1]} : vector<18x18x4xf32> to vector<16x16x4xf32>
    %18 = vector.shape_cast %17 : vector<16x16x4xf32> to vector<256x4xf32>
    %19 = vector.extract_strided_slice %4 {offsets = [2, 1, 0], sizes = [16, 16, 4], strides = [1, 1, 1]} : vector<18x18x4xf32> to vector<16x16x4xf32>
    %20 = vector.shape_cast %19 : vector<16x16x4xf32> to vector<256x4xf32>
    %21 = vector.extract_strided_slice %4 {offsets = [2, 2, 0], sizes = [16, 16, 4], strides = [1, 1, 1]} : vector<18x18x4xf32> to vector<16x16x4xf32>
    %22 = vector.shape_cast %21 : vector<16x16x4xf32> to vector<256x4xf32>
    %cst = arith.constant 0.000000e+00 : f32
    %23 = vector.broadcast %cst : f32 to vector<256x92xf32>
    %24 = tpu.concatenate %6, %8, %10, %12, %14, %16, %18, %20, %22, %23 in 1 : vector<256x4xf32>, vector<256x4xf32>, vector<256x4xf32>, vector<256x4xf32>, vector<256x4xf32>, vector<256x4xf32>, vector<256x4xf32>, vector<256x4xf32>, vector<256x4xf32>, vector<256x92xf32> -> vector<256x128xf32>
    %c0_2 = arith.constant 0 : index
    %c0_3 = arith.constant 0 : index
    %25 = vector.load %arg3[%c0_2, %c0_3] : memref<128x128xf32, #tpu.memory_space<vmem>>, vector<128x128xf32>
    %cst_4 = arith.constant dense<0.000000e+00> : vector<256x128xf32>
    %26 = tpu.matmul %24, %25, %cst_4 {dimension_numbers = #tpu.dot_dimension_numbers<[1], [0], [0], [1], [0, 0, 1, 1], [], []>} : vector<256x128xf32>, vector<128x128xf32>, vector<256x128xf32> -> vector<256x128xf32>
    %c0_5 = arith.constant 0 : index
    %c0_6 = arith.constant 0 : index
    %27 = vector.load %arg4[%c0_5, %c0_6] : memref<256x128xf32, #tpu.memory_space<vmem>>, vector<256x128xf32>
    tpu.vector_store %arg4[%c0_5, %c0_6], %26 {strides = array<i32>} : memref<256x128xf32, #tpu.memory_space<vmem>>, vector<256x128xf32>,
    %cst_7 = arith.constant dense<0.000000e+00> : vector<128xf32>
    %28 = vector.multi_reduction <add>, %26, %cst_7 [0] : vector<256x128xf32> to vector<128xf32>
    %29 = vector.shape_cast %28 : vector<128xf32> to vector<1x128xf32>
    %30 = arith.mulf %26, %26 : vector<256x128xf32>
    %cst_8 = arith.constant dense<0.000000e+00> : vector<128xf32>
    %31 = vector.multi_reduction <add>, %30, %cst_8 [0] : vector<256x128xf32> to vector<128xf32>
    %32 = vector.shape_cast %31 : vector<128xf32> to vector<1x128xf32>
    %33 = tpu.concatenate %29, %32 in 0 : vector<1x128xf32>, vector<1x128xf32> -> vector<2x128xf32>
    %34 = vector.shape_cast %33 : vector<2x128xf32> to vector<1x2x128xf32>
    %c0_9 = arith.constant 0 : index
    %c0_10 = arith.constant 0 : index
    %c0_11 = arith.constant 0 : index
    %35 = vector.load %arg5[%c0_9, %c0_10, %c0_11] : memref<1x2x128xf32, #tpu.memory_space<vmem>>, vector<1x2x128xf32>
    tpu.vector_store %arg5[%c0_9, %c0_10, %c0_11], %34 {strides = array<i32>} : memref<1x2x128xf32, #tpu.memory_space<vmem>>, vector<1x2x128xf32>,
    return
  }
  func.func @transform_0(%arg0: i32, %arg1: i32) -> (i32, i32, i32, i32) {
    %c0_i32 = arith.constant 0 : i32
    %c0_i32_0 = arith.constant 0 : i32
    %c0_i32_1 = arith.constant 0 : i32
    %c0_i32_2 = arith.constant 0 : i32
    return %arg0, %c0_i32, %c0_i32_0, %c0_i32_1 : i32, i32, i32, i32
  }
  func.func @transform_1(%arg0: i32, %arg1: i32) -> (i32, i32) {
    %c0_i32 = arith.constant 0 : i32
    %c0_i32_0 = arith.constant 0 : i32
    %c0_i32_1 = arith.constant 0 : i32
    return %c0_i32, %c0_i32_0 : i32, i32
  }
  func.func @transform_2(%arg0: i32, %arg1: i32) -> (i32, i32) {
    %c1_i32 = arith.constant 1 : i32
    %0 = arith.muli %arg0, %c1_i32 : i32
    %1 = arith.addi %0, %arg1 : i32
    %c0_i32 = arith.constant 0 : i32
    %c0_i32_0 = arith.constant 0 : i32
    return %1, %c0_i32 : i32, i32
  }
  func.func @transform_3(%arg0: i32, %arg1: i32) -> (i32, i32, i32) {
    %c1_i32 = arith.constant 1 : i32
    %0 = arith.muli %arg0, %c1_i32 : i32
    %1 = arith.addi %0, %arg1 : i32
    %c0_i32 = arith.constant 0 : i32
    %c0_i32_0 = arith.constant 0 : i32
    %c0_i32_1 = arith.constant 0 : i32
    return %1, %c0_i32, %c0_i32_0 : i32, i32, i32
  }
}

module attributes {stable_mosaic.version = 11 : i64} {
  func.func @_bn_relu_kernel(%arg0: i32, %arg1: memref<512x128xf32, #tpu.memory_space<vmem>>, %arg2: memref<1x128xf32, #tpu.memory_space<vmem>>, %arg3: memref<1x128xf32, #tpu.memory_space<vmem>>, %arg4: memref<512x128xf32, #tpu.memory_space<vmem>>) attributes {dimension_semantics = [#tpu.dimension_semantics<parallel>], iteration_bounds = array<i64: 1>, scalar_prefetch = 0 : i64, scratch_operands = 0 : i64, tpu.core_type = #tpu.core_type<tc>, window_params = [{transform_indices = @transform_0, window_bounds = array<i64: 512, 128>}, {pipeline_mode = #tpu.pipeline_mode<synchronous>, transform_indices = @transform_1, window_bounds = array<i64: 1, 128>}, {pipeline_mode = #tpu.pipeline_mode<synchronous>, transform_indices = @transform_2, window_bounds = array<i64: 1, 128>}, {transform_indices = @transform_3, window_bounds = array<i64: 512, 128>}]} {
    %c0 = arith.constant 0 : index
    %c0_0 = arith.constant 0 : index
    %0 = vector.load %arg1[%c0, %c0_0] : memref<512x128xf32, #tpu.memory_space<vmem>>, vector<512x128xf32>
    %c0_1 = arith.constant 0 : index
    %c0_2 = arith.constant 0 : index
    %1 = vector.load %arg2[%c0_1, %c0_2] : memref<1x128xf32, #tpu.memory_space<vmem>>, vector<1x128xf32>
    %2 = vector.broadcast %1 : vector<1x128xf32> to vector<512x128xf32>
    %3 = arith.mulf %0, %2 : vector<512x128xf32>
    %c0_3 = arith.constant 0 : index
    %c0_4 = arith.constant 0 : index
    %4 = vector.load %arg3[%c0_3, %c0_4] : memref<1x128xf32, #tpu.memory_space<vmem>>, vector<1x128xf32>
    %5 = vector.broadcast %4 : vector<1x128xf32> to vector<512x128xf32>
    %6 = arith.addf %3, %5 : vector<512x128xf32>
    %cst = arith.constant 0.000000e+00 : f32
    %7 = vector.broadcast %cst : f32 to vector<512x128xf32>
    %8 = arith.maximumf %6, %7 : vector<512x128xf32>
    %c0_5 = arith.constant 0 : index
    %c0_6 = arith.constant 0 : index
    %9 = vector.load %arg4[%c0_5, %c0_6] : memref<512x128xf32, #tpu.memory_space<vmem>>, vector<512x128xf32>
    tpu.vector_store %arg4[%c0_5, %c0_6], %8 {strides = array<i32>} : memref<512x128xf32, #tpu.memory_space<vmem>>, vector<512x128xf32>,
    return
  }
  func.func @transform_0(%arg0: i32) -> (i32, i32) {
    %c0_i32 = arith.constant 0 : i32
    %c0_i32_0 = arith.constant 0 : i32
    return %arg0, %c0_i32 : i32, i32
  }
  func.func @transform_1(%arg0: i32) -> (i32, i32) {
    %c0_i32 = arith.constant 0 : i32
    %c0_i32_0 = arith.constant 0 : i32
    %c0_i32_1 = arith.constant 0 : i32
    return %c0_i32, %c0_i32_0 : i32, i32
  }
  func.func @transform_2(%arg0: i32) -> (i32, i32) {
    %c0_i32 = arith.constant 0 : i32
    %c0_i32_0 = arith.constant 0 : i32
    %c0_i32_1 = arith.constant 0 : i32
    return %c0_i32, %c0_i32_0 : i32, i32
  }
  func.func @transform_3(%arg0: i32) -> (i32, i32) {
    %c0_i32 = arith.constant 0 : i32
    %c0_i32_0 = arith.constant 0 : i32
    return %arg0, %c0_i32 : i32, i32
  }
}

</mosaic_0001>

<llo_original>
// kernel: conv_bn_relu_pallas.3
$region0: #{conv_bn_relu_pallas.3}
  #allocation0 [shape = 'u32[]', space=smem, size = 0x4, offset = 0x4, fixed_abs, tag = 'smem constant byte address 0x4 - core index']
  #allocation1 [shape = 'u32[144,128]{1,0:T(1,128)}', space=vmem, size = 0x12000, scoped, tag = 'internal scratch']
  %s0 = inlined_call_operand.vmem [shape: f32[512,128], index: 0, kind: input, shape index: {}]
  %s1 = inlined_call_operand.vmem [shape: f32[1,128], index: 1, kind: input, shape index: {}]
  %s2 = inlined_call_operand.vmem [shape: f32[1,128], index: 2, kind: input, shape index: {}]
  %s3 = inlined_call_operand.vmem [shape: f32[512,128], index: 3, kind: output, shape index: {}]
  %s4 = sld [smem:[#allocation0]]
  $region22: #{conv_bn_relu_pallas.3} parent=0
    _
  %s6 = ssub.s32 1, %s4
  %s7 = scalar_select 0, %s6, %s4
  // Predicated region
  $region2: #{conv_bn_relu_pallas.3} parent=0 // pred_check
    _
  $region3: #{conv_bn_relu_pallas.3} parent=0 // pred_check_branch
    %9 = sbr.rel (0) target = $region5
  $region4: #{conv_bn_relu_pallas.3} parent=0 // pred_region
    _
  $region5: #{conv_bn_relu_pallas.3} parent=0 // pred_fallthru
    _
  // Predicated region
  $region6: #{conv_bn_relu_pallas.3} parent=0 // pred_check
    _
  $region7: #{conv_bn_relu_pallas.3} parent=0 // pred_check_branch
    %11 = sbr.rel (0) target = $region9
  $region8: #{conv_bn_relu_pallas.3} parent=0 // pred_region
    _
  $region9: #{conv_bn_relu_pallas.3} parent=0 // pred_fallthru
    _
  // Predicated region
  $region10: #{conv_bn_relu_pallas.3} parent=0 // pred_check
    _
  $region11: #{conv_bn_relu_pallas.3} parent=0 // pred_check_branch
    %13 = sbr.rel (0) target = $region13
  $region12: #{conv_bn_relu_pallas.3} parent=0 // pred_region
    _
  $region13: #{conv_bn_relu_pallas.3} parent=0 // pred_fallthru
    _
  %v14 = vld [vmem:[%s0] sm:$0xff]
  %v15 = vld [vmem:[%s0 + $0x8] sm:$0xff]
  %v16 = vld [vmem:[%s0 + $0x10] sm:$0xff]
  %v17 = vld [vmem:[%s0 + $0x18] sm:$0xff]
  %v18 = vld [vmem:[%s0 + $0x20] sm:$0xff]
  %v19 = vld [vmem:[%s0 + $0x28] sm:$0xff]
  %v20 = vld [vmem:[%s0 + $0x30] sm:$0xff]
  %v21 = vld [vmem:[%s0 + $0x38] sm:$0xff]
  %v22 = vld [vmem:[%s0 + $0x40] sm:$0xff]
  %v23 = vld [vmem:[%s0 + $0x48] sm:$0xff]
  %v24 = vld [vmem:[%s0 + $0x50] sm:$0xff]
  %v25 = vld [vmem:[%s0 + $0x58] sm:$0xff]
  %v26 = vld [vmem:[%s0 + $0x60] sm:$0xff]
  %v27 = vld [vmem:[%s0 + $0x68] sm:$0xff]
  %v28 = vld [vmem:[%s0 + $0x70] sm:$0xff]
  %v29 = vld [vmem:[%s0 + $0x78] sm:$0xff]
  %v30 = vld [vmem:[%s0 + $0x80] sm:$0xff]
  %v31 = vld [vmem:[%s0 + $0x88] sm:$0xff]
  %v32 = vld [vmem:[%s0 + $0x90] sm:$0xff]
  %v33 = vld [vmem:[%s0 + $0x98] sm:$0xff]
  %v34 = vld [vmem:[%s0 + $0xa0] sm:$0xff]
  %v35 = vld [vmem:[%s0 + $0xa8] sm:$0xff]
  %v36 = vld [vmem:[%s0 + $0xb0] sm:$0xff]
  %v37 = vld [vmem:[%s0 + $0xb8] sm:$0xff]
  %v38 = vld [vmem:[%s0 + $0xc0] sm:$0xff]
  %v39 = vld [vmem:[%s0 + $0xc8] sm:$0xff]
  %v40 = vld [vmem:[%s0 + $0xd0] sm:$0xff]
  %v41 = vld [vmem:[%s0 + $0xd8] sm:$0xff]
  %v42 = vld [vmem:[%s0 + $0xe0] sm:$0xff]
  %v43 = vld [vmem:[%s0 + $0xe8] sm:$0xff]
  %v44 = vld [vmem:[%s0 + $0xf0] sm:$0xff]
  %v45 = vld [vmem:[%s0 + $0xf8] sm:$0xff]
  %v46 = vld [vmem:[%s0 + $0x100] sm:$0xff]
  %v47 = vld [vmem:[%s0 + $0x108] sm:$0xff]
  %v48 = vld [vmem:[%s0 + $0x110] sm:$0xff]
  %v49 = vld [vmem:[%s0 + $0x118] sm:$0xff]
  %v50 = vld [vmem:[%s0 + $0x120] sm:$0xff]
  %v51 = vld [vmem:[%s0 + $0x128] sm:$0xff]
  %v52 = vld [vmem:[%s0 + $0x130] sm:$0xff]
  %v53 = vld [vmem:[%s0 + $0x138] sm:$0xff]
  %v54 = vld [vmem:[%s0 + $0x140] sm:$0xff]
  %v55 = vld [vmem:[%s0 + $0x148] sm:$0xff]
  %v56 = vld [vmem:[%s0 + $0x150] sm:$0xff]
  %v57 = vld [vmem:[%s0 + $0x158] sm:$0xff]
  %v58 = vld [vmem:[%s0 + $0x160] sm:$0xff]
  %v59 = vld [vmem:[%s0 + $0x168] sm:$0xff]
  %v60 = vld [vmem:[%s0 + $0x170] sm:$0xff]
  %v61 = vld [vmem:[%s0 + $0x178] sm:$0xff]
  %v62 = vld [vmem:[%s0 + $0x180] sm:$0xff]
  %v63 = vld [vmem:[%s0 + $0x188] sm:$0xff]
  %v64 = vld [vmem:[%s0 + $0x190] sm:$0xff]
  %v65 = vld [vmem:[%s0 + $0x198] sm:$0xff]
  %v66 = vld [vmem:[%s0 + $0x1a0] sm:$0xff]
  %v67 = vld [vmem:[%s0 + $0x1a8] sm:$0xff]
  %v68 = vld [vmem:[%s0 + $0x1b0] sm:$0xff]
  %v69 = vld [vmem:[%s0 + $0x1b8] sm:$0xff]
  %v70 = vld [vmem:[%s0 + $0x1c0] sm:$0xff]
  %v71 = vld [vmem:[%s0 + $0x1c8] sm:$0xff]
  %v72 = vld [vmem:[%s0 + $0x1d0] sm:$0xff]
  %v73 = vld [vmem:[%s0 + $0x1d8] sm:$0xff]
  %v74 = vld [vmem:[%s0 + $0x1e0] sm:$0xff]
  %v75 = vld [vmem:[%s0 + $0x1e8] sm:$0xff]
  %v76 = vld [vmem:[%s0 + $0x1f0] sm:$0xff]
  %v77 = vld [vmem:[%s0 + $0x1f8] sm:$0xff]
  %v78 = vld [vmem:[%s1] sm:$0x1]
  %v80 = vlaneseq
  %v81 = vshrl.u32 %v80, 7
  %v82 = vsub.s32 0, %v81
  %v83 = vrot.slane %v78, %v82
  %v85 = vmul.f32 %v14, %v83
  %v86 = vmul.f32 %v15, %v83
  %v87 = vmul.f32 %v16, %v83
  %v88 = vmul.f32 %v17, %v83
  %v89 = vmul.f32 %v18, %v83
  %v90 = vmul.f32 %v19, %v83
  %v91 = vmul.f32 %v20, %v83
  %v92 = vmul.f32 %v21, %v83
  %v93 = vmul.f32 %v22, %v83
  %v94 = vmul.f32 %v23, %v83
  %v95 = vmul.f32 %v24, %v83
  %v96 = vmul.f32 %v25, %v83
  %v97 = vmul.f32 %v26, %v83
  %v98 = vmul.f32 %v27, %v83
  %v99 = vmul.f32 %v28, %v83
  %v100 = vmul.f32 %v29, %v83
  %v101 = vmul.f32 %v30, %v83
  %v102 = vmul.f32 %v31, %v83
  %v103 = vmul.f32 %v32, %v83
  %v104 = vmul.f32 %v33, %v83
  %v105 = vmul.f32 %v34, %v83
  %v106 = vmul.f32 %v35, %v83
  %v107 = vmul.f32 %v36, %v83
  %v108 = vmul.f32 %v37, %v83
  %v109 = vmul.f32 %v38, %v83
  %v110 = vmul.f32 %v39, %v83
  %v111 = vmul.f32 %v40, %v83
  %v112 = vmul.f32 %v41, %v83
  %v113 = vmul.f32 %v42, %v83
  %v114 = vmul.f32 %v43, %v83
  %v115 = vmul.f32 %v44, %v83
  %v116 = vmul.f32 %v45, %v83
  %v117 = vmul.f32 %v46, %v83
  %v118 = vmul.f32 %v47, %v83
  %v119 = vmul.f32 %v48, %v83
  %v120 = vmul.f32 %v49, %v83
  %v121 = vmul.f32 %v50, %v83
  %v122 = vmul.f32 %v51, %v83
  %v123 = vmul.f32 %v52, %v83
  %v124 = vmul.f32 %v53, %v83
  %v125 = vmul.f32 %v54, %v83
  %v126 = vmul.f32 %v55, %v83
  %v127 = vmul.f32 %v56, %v83
  %v128 = vmul.f32 %v57, %v83
  %v129 = vmul.f32 %v58, %v83
  %v130 = vmul.f32 %v59, %v83
  %v131 = vmul.f32 %v60, %v83
  %v132 = vmul.f32 %v61, %v83
  %v133 = vmul.f32 %v62, %v83
  %v134 = vmul.f32 %v63, %v83
  %v135 = vmul.f32 %v64, %v83
  %v136 = vmul.f32 %v65, %v83
  %v137 = vmul.f32 %v66, %v83
  %v138 = vmul.f32 %v67, %v83
  %v139 = vmul.f32 %v68, %v83
  %v140 = vmul.f32 %v69, %v83
  %v141 = vmul.f32 %v70, %v83
  %v142 = vmul.f32 %v71, %v83
  %v143 = vmul.f32 %v72, %v83
  %v144 = vmul.f32 %v73, %v83
  %v145 = vmul.f32 %v74, %v83
  %v146 = vmul.f32 %v75, %v83
  %v147 = vmul.f32 %v76, %v83
  %v148 = vmul.f32 %v77, %v83
  %v149 = vld [vmem:[%s2] sm:$0x1]
  %v151 = vlaneseq
  %v152 = vshrl.u32 %v151, 7
  %v153 = vsub.s32 0, %v152
  %v154 = vrot.slane %v149, %v153
  %v156 = vadd.f32 %v85, %v154
  %v157 = vadd.f32 %v86, %v154
  %v158 = vadd.f32 %v87, %v154
  %v159 = vadd.f32 %v88, %v154
  %v160 = vadd.f32 %v89, %v154
  %v161 = vadd.f32 %v90, %v154
  %v162 = vadd.f32 %v91, %v154
  %v163 = vadd.f32 %v92, %v154
  %v164 = vadd.f32 %v93, %v154
  %v165 = vadd.f32 %v94, %v154
  %v166 = vadd.f32 %v95, %v154
  %v167 = vadd.f32 %v96, %v154
  %v168 = vadd.f32 %v97, %v154
  %v169 = vadd.f32 %v98, %v154
  %v170 = vadd.f32 %v99, %v154
  %v171 = vadd.f32 %v100, %v154
  %v172 = vadd.f32 %v101, %v154
  %v173 = vadd.f32 %v102, %v154
  %v174 = vadd.f32 %v103, %v154
  %v175 = vadd.f32 %v104, %v154
  %v176 = vadd.f32 %v105, %v154
  %v177 = vadd.f32 %v106, %v154
  %v178 = vadd.f32 %v107, %v154
  %v179 = vadd.f32 %v108, %v154
  %v180 = vadd.f32 %v109, %v154
  %v181 = vadd.f32 %v110, %v154
  %v182 = vadd.f32 %v111, %v154
  %v183 = vadd.f32 %v112, %v154
  %v184 = vadd.f32 %v113, %v154
  %v185 = vadd.f32 %v114, %v154
  %v186 = vadd.f32 %v115, %v154
  %v187 = vadd.f32 %v116, %v154
  %v188 = vadd.f32 %v117, %v154
  %v189 = vadd.f32 %v118, %v154
  %v190 = vadd.f32 %v119, %v154
  %v191 = vadd.f32 %v120, %v154
  %v192 = vadd.f32 %v121, %v154
  %v193 = vadd.f32 %v122, %v154
  %v194 = vadd.f32 %v123, %v154
  %v195 = vadd.f32 %v124, %v154
  %v196 = vadd.f32 %v125, %v154
  %v197 = vadd.f32 %v126, %v154
  %v198 = vadd.f32 %v127, %v154
  %v199 = vadd.f32 %v128, %v154
  %v200 = vadd.f32 %v129, %v154
  %v201 = vadd.f32 %v130, %v154
  %v202 = vadd.f32 %v131, %v154
  %v203 = vadd.f32 %v132, %v154
  %v204 = vadd.f32 %v133, %v154
  %v205 = vadd.f32 %v134, %v154
  %v206 = vadd.f32 %v135, %v154
  %v207 = vadd.f32 %v136, %v154
  %v208 = vadd.f32 %v137, %v154
  %v209 = vadd.f32 %v138, %v154
  %v210 = vadd.f32 %v139, %v154
  %v211 = vadd.f32 %v140, %v154
  %v212 = vadd.f32 %v141, %v154
  %v213 = vadd.f32 %v142, %v154
  %v214 = vadd.f32 %v143, %v154
  %v215 = vadd.f32 %v144, %v154
  %v216 = vadd.f32 %v145, %v154
  %v217 = vadd.f32 %v146, %v154
  %v218 = vadd.f32 %v147, %v154
  %v219 = vadd.f32 %v148, %v154
  %v220 = vmax.f32 %v156, 0.0
  %v221 = vmax.f32 %v157, 0.0
  %v222 = vmax.f32 %v158, 0.0
  %v223 = vmax.f32 %v159, 0.0
  %v224 = vmax.f32 %v160, 0.0
  %v225 = vmax.f32 %v161, 0.0
  %v226 = vmax.f32 %v162, 0.0
  %v227 = vmax.f32 %v163, 0.0
  %v228 = vmax.f32 %v164, 0.0
  %v229 = vmax.f32 %v165, 0.0
  %v230 = vmax.f32 %v166, 0.0
  %v231 = vmax.f32 %v167, 0.0
  %v232 = vmax.f32 %v168, 0.0
  %v233 = vmax.f32 %v169, 0.0
  %v234 = vmax.f32 %v170, 0.0
  %v235 = vmax.f32 %v171, 0.0
  %v236 = vmax.f32 %v172, 0.0
  %v237 = vmax.f32 %v173, 0.0
  %v238 = vmax.f32 %v174, 0.0
  %v239 = vmax.f32 %v175, 0.0
  %v240 = vmax.f32 %v176, 0.0
  %v241 = vmax.f32 %v177, 0.0
  %v242 = vmax.f32 %v178, 0.0
  %v243 = vmax.f32 %v179, 0.0
  %v244 = vmax.f32 %v180, 0.0
  %v245 = vmax.f32 %v181, 0.0
  %v246 = vmax.f32 %v182, 0.0
  %v247 = vmax.f32 %v183, 0.0
  %v248 = vmax.f32 %v184, 0.0
  %v249 = vmax.f32 %v185, 0.0
  %v250 = vmax.f32 %v186, 0.0
  %v251 = vmax.f32 %v187, 0.0
  %v252 = vmax.f32 %v188, 0.0
  %v253 = vmax.f32 %v189, 0.0
  %v254 = vmax.f32 %v190, 0.0
  %v255 = vmax.f32 %v191, 0.0
  %v256 = vmax.f32 %v192, 0.0
  %v257 = vmax.f32 %v193, 0.0
  %v258 = vmax.f32 %v194, 0.0
  %v259 = vmax.f32 %v195, 0.0
  %v260 = vmax.f32 %v196, 0.0
  %v261 = vmax.f32 %v197, 0.0
  %v262 = vmax.f32 %v198, 0.0
  %v263 = vmax.f32 %v199, 0.0
  %v264 = vmax.f32 %v200, 0.0
  %v265 = vmax.f32 %v201, 0.0
  %v266 = vmax.f32 %v202, 0.0
  %v267 = vmax.f32 %v203, 0.0
  %v268 = vmax.f32 %v204, 0.0
  %v269 = vmax.f32 %v205, 0.0
  %v270 = vmax.f32 %v206, 0.0
  %v271 = vmax.f32 %v207, 0.0
  %v272 = vmax.f32 %v208, 0.0
  %v273 = vmax.f32 %v209, 0.0
  %v274 = vmax.f32 %v210, 0.0
  %v275 = vmax.f32 %v211, 0.0
  %v276 = vmax.f32 %v212, 0.0
  %v277 = vmax.f32 %v213, 0.0
  %v278 = vmax.f32 %v214, 0.0
  %v279 = vmax.f32 %v215, 0.0
  %v280 = vmax.f32 %v216, 0.0
  %v281 = vmax.f32 %v217, 0.0
  %v282 = vmax.f32 %v218, 0.0
  %v283 = vmax.f32 %v219, 0.0
  %284 = vst [vmem:[%s3] sm:$0xff] %v220
  %285 = vst [vmem:[%s3 + $0x8] sm:$0xff] %v221
  %286 = vst [vmem:[%s3 + $0x10] sm:$0xff] %v222
  %287 = vst [vmem:[%s3 + $0x18] sm:$0xff] %v223
  %288 = vst [vmem:[%s3 + $0x20] sm:$0xff] %v224
  %289 = vst [vmem:[%s3 + $0x28] sm:$0xff] %v225
  %290 = vst [vmem:[%s3 + $0x30] sm:$0xff] %v226
  %291 = vst [vmem:[%s3 + $0x38] sm:$0xff] %v227
  %292 = vst [vmem:[%s3 + $0x40] sm:$0xff] %v228
  %293 = vst [vmem:[%s3 + $0x48] sm:$0xff] %v229
  %294 = vst [vmem:[%s3 + $0x50] sm:$0xff] %v230
  %295 = vst [vmem:[%s3 + $0x58] sm:$0xff] %v231
  %296 = vst [vmem:[%s3 + $0x60] sm:$0xff] %v232
  %297 = vst [vmem:[%s3 + $0x68] sm:$0xff] %v233
  %298 = vst [vmem:[%s3 + $0x70] sm:$0xff] %v234
  %299 = vst [vmem:[%s3 + $0x78] sm:$0xff] %v235
  %300 = vst [vmem:[%s3 + $0x80] sm:$0xff] %v236
  %301 = vst [vmem:[%s3 + $0x88] sm:$0xff] %v237
  %302 = vst [vmem:[%s3 + $0x90] sm:$0xff] %v238
  %303 = vst [vmem:[%s3 + $0x98] sm:$0xff] %v239
  %304 = vst [vmem:[%s3 + $0xa0] sm:$0xff] %v240
  %305 = vst [vmem:[%s3 + $0xa8] sm:$0xff] %v241
  %306 = vst [vmem:[%s3 + $0xb0] sm:$0xff] %v242
  %307 = vst [vmem:[%s3 + $0xb8] sm:$0xff] %v243
  %308 = vst [vmem:[%s3 + $0xc0] sm:$0xff] %v244
  %309 = vst [vmem:[%s3 + $0xc8] sm:$0xff] %v245
  %310 = vst [vmem:[%s3 + $0xd0] sm:$0xff] %v246
  %311 = vst [vmem:[%s3 + $0xd8] sm:$0xff] %v247
  %312 = vst [vmem:[%s3 + $0xe0] sm:$0xff] %v248
  %313 = vst [vmem:[%s3 + $0xe8] sm:$0xff] %v249
  %314 = vst [vmem:[%s3 + $0xf0] sm:$0xff] %v250
  %315 = vst [vmem:[%s3 + $0xf8] sm:$0xff] %v251
  %316 = vst [vmem:[%s3 + $0x100] sm:$0xff] %v252
  %317 = vst [vmem:[%s3 + $0x108] sm:$0xff] %v253
  %318 = vst [vmem:[%s3 + $0x110] sm:$0xff] %v254
  %319 = vst [vmem:[%s3 + $0x118] sm:$0xff] %v255
  %320 = vst [vmem:[%s3 + $0x120] sm:$0xff] %v256
  %321 = vst [vmem:[%s3 + $0x128] sm:$0xff] %v257
  %322 = vst [vmem:[%s3 + $0x130] sm:$0xff] %v258
  %323 = vst [vmem:[%s3 + $0x138] sm:$0xff] %v259
  %324 = vst [vmem:[%s3 + $0x140] sm:$0xff] %v260
  %325 = vst [vmem:[%s3 + $0x148] sm:$0xff] %v261
  %326 = vst [vmem:[%s3 + $0x150] sm:$0xff] %v262
  %327 = vst [vmem:[%s3 + $0x158] sm:$0xff] %v263
  %328 = vst [vmem:[%s3 + $0x160] sm:$0xff] %v264
  %329 = vst [vmem:[%s3 + $0x168] sm:$0xff] %v265
  %330 = vst [vmem:[%s3 + $0x170] sm:$0xff] %v266
  %331 = vst [vmem:[%s3 + $0x178] sm:$0xff] %v267
  %332 = vst [vmem:[%s3 + $0x180] sm:$0xff] %v268
  %333 = vst [vmem:[%s3 + $0x188] sm:$0xff] %v269
  %334 = vst [vmem:[%s3 + $0x190] sm:$0xff] %v270
  %335 = vst [vmem:[%s3 + $0x198] sm:$0xff] %v271
  %336 = vst [vmem:[%s3 + $0x1a0] sm:$0xff] %v272
  %337 = vst [vmem:[%s3 + $0x1a8] sm:$0xff] %v273
  %338 = vst [vmem:[%s3 + $0x1b0] sm:$0xff] %v274
  %339 = vst [vmem:[%s3 + $0x1b8] sm:$0xff] %v275
  %340 = vst [vmem:[%s3 + $0x1c0] sm:$0xff] %v276
  %341 = vst [vmem:[%s3 + $0x1c8] sm:$0xff] %v277
  %342 = vst [vmem:[%s3 + $0x1d0] sm:$0xff] %v278
  %343 = vst [vmem:[%s3 + $0x1d8] sm:$0xff] %v279
  %344 = vst [vmem:[%s3 + $0x1e0] sm:$0xff] %v280
  %345 = vst [vmem:[%s3 + $0x1e8] sm:$0xff] %v281
  %346 = vst [vmem:[%s3 + $0x1f0] sm:$0xff] %v282
  %347 = vst [vmem:[%s3 + $0x1f8] sm:$0xff] %v283
  // Predicated region
  $region14: #{conv_bn_relu_pallas.3} parent=0 // pred_check
    _
  $region15: #{conv_bn_relu_pallas.3} parent=0 // pred_check_branch
    %349 = sbr.rel (0) target = $region17
  $region16: #{conv_bn_relu_pallas.3} parent=0 // pred_region
    _
  $region17: #{conv_bn_relu_pallas.3} parent=0 // pred_fallthru
    _
  // Predicated region
  $region18: #{conv_bn_relu_pallas.3} parent=0 // pred_check
    _
  $region19: #{conv_bn_relu_pallas.3} parent=0 // pred_check_branch
    %351 = sbr.rel (0) target = $region21
  $region20: #{conv_bn_relu_pallas.3} parent=0 // pred_region
    _
  $region21: #{conv_bn_relu_pallas.3} parent=0 // pred_fallthru
    _

// kernel: conv_bn_relu_pallas.2
$region0: #{conv_bn_relu_pallas.2}
  #allocation0 [shape = 'u32[]', space=smem, size = 0x4, offset = 0x4, fixed_abs, tag = 'smem constant byte address 0x4 - core index']
  #allocation1 [shape = 'u32[144,128]{1,0:T(1,128)}', space=vmem, size = 0x12000, scoped, tag = 'internal scratch']
  %s0 = inlined_call_operand.vmem [shape: f32[2,18,18,4], index: 0, kind: input, shape index: {}]
  %s1 = inlined_call_operand.vmem [shape: f32[128,128], index: 1, kind: input, shape index: {}]
  %s2 = inlined_call_operand.vmem [shape: f32[512,128], index: 2, kind: output, shape index: {0}]
  %s3 = inlined_call_operand.vmem [shape: f32[2,2,128], index: 3, kind: output, shape index: {1}]
  %4 = xla_tuple %s2, %s3
  %s5 = sld [smem:[#allocation0]]
  $region49: #{conv_bn_relu_pallas.2} parent=0
    _
  %s7 = ssub.s32 1, %s5
  %s8 = scalar_select 0, %s7, %s5
  loop: start=0, step=1, limit=4
  $region2: #{conv_bn_relu_pallas.2} parent=0 // loop_pre_header
    _
  $region3: #{conv_bn_relu_pallas.2} parent=0 // loop_header
    %s10 = sphi 0, %s14
    %p11 = scmp.ge.s32.totalorder %s10, 4
    %s17 = sphi 0, %s29
    %s18 = sphi 0, %s25
    %s19 = sphi 0, %s17
    %s20 = sphi 0, %s18
    %s21 = sphi 0, %s19
    %s22 = sphi 0, %s20
    %s32 = sphi 0, %s34
    %s35 = sphi 0, %s32
    %s36 = sphi 0, %s35
    %s52 = sphi 0, %s36
    %s56 = sphi 0, %s56
    %s58 = sphi 0, %s56
    %s59 = sphi 0, %s58
    %s73 = sphi 0, %s59
    %s81 = sphi 0, %s83
    %s84 = sphi 0, %s81
    %s85 = sphi 0, %s84
    %s101 = sphi 0, %s85
    %s109 = sphi 0, %s111
    %s112 = sphi 0, %s109
    %s113 = sphi 0, %s112
    %s129 = sphi 0, %s113
  $region4: #{conv_bn_relu_pallas.2} parent=0 // loop_header_branch
    %13 = sbr.rel (%p11) target = $region8
  $region5: #{conv_bn_relu_pallas.2} parent=0 // loop_body
    %s15 = ssub.s32 %s10, 1
    %s16 = ssub.s32 %s10, 2
    %s23 = sadd.s32 1, %s18
    %p24 = scmp.ge.s32.totalorder %s23, 1
    %s25 = scalar_select %p24, 0, %s23
    %s26 = sadd.s32 1, %s17
    %s27 = scalar_select %p24, %s26, %s17
    %p28 = scmp.ge.s32.totalorder %s27, 2
    %s29 = scalar_select %p28, 0, %s27
    %s30 = ssub.s32 %s17, %s29
    %p31 = scmp.eq.s32.totalorder %s30, 0
    %s33 = sadd.s32 %s32, 1
    %s34 = scalar_select %p31, %s32, %s33
    %p37 = pneg %p31
    %p38 = scmp.eq.s32.totalorder %s10, 1
    %p39 = por %p37, %p38
    %p40 = scmp.ne.s32.totalorder %s32, %s35
    %p41 = scmp.eq.s32.totalorder %s10, 0
    %p42 = por %p40, %p41
    %p43 = scmp.ne.s32.totalorder %s32, %s35
    %p44 = scmp.eq.s32.totalorder %s15, 1
    %p45 = por %p43, %p44
    %p46 = scmp.ne.s32.totalorder %s35, %s36
    %p47 = scmp.eq.s32.totalorder %s15, 0
    %p48 = por %p46, %p47
    %p49 = scmp.ne.s32.totalorder %s35, %s36
    %p50 = scmp.eq.s32.totalorder %s16, 1
    %p51 = por %p49, %p50
    %p53 = scmp.ne.s32.totalorder %s36, %s52
    %p54 = scmp.eq.s32.totalorder %s16, 0
    %p55 = por %p53, %p54
    %s57 = sadd.s32 %s56, 1
    %p60 = scmp.eq.s32.totalorder %s10, 1
    %p61 = scmp.ne.s32.totalorder %s56, %s58
    %p62 = scmp.eq.s32.totalorder %s10, 0
    %p63 = por %p61, %p62
    %p64 = scmp.ne.s32.totalorder %s56, %s58
    %p65 = scmp.eq.s32.totalorder %s15, 1
    %p66 = por %p64, %p65
    %p67 = scmp.ne.s32.totalorder %s58, %s59
    %p68 = scmp.eq.s32.totalorder %s15, 0
    %p69 = por %p67, %p68
    %p70 = scmp.ne.s32.totalorder %s58, %s59
    %p71 = scmp.eq.s32.totalorder %s16, 1
    %p72 = por %p70, %p71
    %p74 = scmp.ne.s32.totalorder %s59, %s73
    %p75 = scmp.eq.s32.totalorder %s16, 0
    %p76 = por %p74, %p75
    %s77 = sadd.s32 %s17, %s18
    %s78 = sadd.s32 %s29, %s25
    %s79 = ssub.s32 %s77, %s78
    %p80 = scmp.eq.s32.totalorder %s79, 0
    %s82 = sadd.s32 %s81, 1
    %s83 = scalar_select %p80, %s81, %s82
    %p86 = pneg %p80
    %p87 = scmp.eq.s32.totalorder %s10, 1
    %p88 = por %p86, %p87
    %p89 = scmp.ne.s32.totalorder %s81, %s84
    %p90 = scmp.eq.s32.totalorder %s10, 0
    %p91 = por %p89, %p90
    %p92 = scmp.ne.s32.totalorder %s81, %s84
    %p93 = scmp.eq.s32.totalorder %s15, 1
    %p94 = por %p92, %p93
    %p95 = scmp.ne.s32.totalorder %s84, %s85
    %p96 = scmp.eq.s32.totalorder %s15, 0
    %p97 = por %p95, %p96
    %p98 = scmp.ne.s32.totalorder %s84, %s85
    %p99 = scmp.eq.s32.totalorder %s16, 1
    %p100 = por %p98, %p99
    %p102 = scmp.ne.s32.totalorder %s85, %s101
    %p103 = scmp.eq.s32.totalorder %s16, 0
    %p104 = por %p102, %p103
    %s105 = sadd.s32 %s17, %s18
    %s106 = sadd.s32 %s29, %s25
    %s107 = ssub.s32 %s105, %s106
    %p108 = scmp.eq.s32.totalorder %s107, 0
    %s110 = sadd.s32 %s109, 1
    %s111 = scalar_select %p108, %s109, %s110
    %p114 = pneg %p108
    %p115 = scmp.eq.s32.totalorder %s10, 1
    %p116 = por %p114, %p115
    %p117 = scmp.ne.s32.totalorder %s109, %s112
    %p118 = scmp.eq.s32.totalorder %s10, 0
    %p119 = por %p117, %p118
    %p120 = scmp.ne.s32.totalorder %s109, %s112
    %p121 = scmp.eq.s32.totalorder %s15, 1
    %p122 = por %p120, %p121
    %p123 = scmp.ne.s32.totalorder %s112, %s113
    %p124 = scmp.eq.s32.totalorder %s15, 0
    %p125 = por %p123, %p124
    %p126 = scmp.ne.s32.totalorder %s112, %s113
    %p127 = scmp.eq.s32.totalorder %s16, 1
    %p128 = por %p126, %p127
    %p130 = scmp.ne.s32.totalorder %s113, %s129
    %p131 = scmp.eq.s32.totalorder %s16, 0
    %p132 = por %p130, %p131
    %p133 = scmp.le.s32.totalorder 1, %s10
    %p134 = scmp.lt.s32.totalorder %s10, 3
    %p135 = pnand %p133, %p134
    %p136 = pneg %p135
    // Predicated region
    $region9: #{conv_bn_relu_pallas.2} parent=5 // pred_check
      _
    $region10: #{conv_bn_relu_pallas.2} parent=5 // pred_check_branch
      %138 = sbr.rel (%p135) target = $region12
    $region11: #{conv_bn_relu_pallas.2} parent=5 // pred_region
      %s139 = ssub.s32 %s10, 1
      // Predicated region
      $region13: #{conv_bn_relu_pallas.2} parent=11 // pred_check
        %p140 = pneg %p69
      $region14: #{conv_bn_relu_pallas.2} parent=11 // pred_check_branch
        %142 = sbr.rel (%p140) target = $region16
      $region15: #{conv_bn_relu_pallas.2} parent=11 // pred_region
        _
      $region16: #{conv_bn_relu_pallas.2} parent=11 // pred_fallthru
        _
    $region12: #{conv_bn_relu_pallas.2} parent=5 // pred_fallthru
      _
    %p143 = scmp.lt.s32.totalorder %s10, 2
    // Predicated region
    $region17: #{conv_bn_relu_pallas.2} parent=5 // pred_check
      %p144 = pneg %p143
    $region18: #{conv_bn_relu_pallas.2} parent=5 // pred_check_branch
      %146 = sbr.rel (%p144) target = $region20
    $region19: #{conv_bn_relu_pallas.2} parent=5 // pred_region
      // Predicated region
      $region21: #{conv_bn_relu_pallas.2} parent=19 // pred_check
        %p147 = pneg %p42
      $region22: #{conv_bn_relu_pallas.2} parent=19 // pred_check_branch
        %149 = sbr.rel (%p147) target = $region24
      $region23: #{conv_bn_relu_pallas.2} parent=19 // pred_region
        %p150 = scmp.lt.s32.totalorder %s17, 1
        %s151 = scalar_select %p150, %s17, 1
        %s152 = smul.addr %s151, 54
        %s153 = smul.addr %s152, 8
        %s154 = scalar_lea.vmem %s0, %s153
      $region24: #{conv_bn_relu_pallas.2} parent=19 // pred_fallthru
        _
    $region20: #{conv_bn_relu_pallas.2} parent=5 // pred_fallthru
      _
    %p155 = scmp.le.s32.totalorder 1, %s10
    %p156 = scmp.lt.s32.totalorder %s10, 3
    %p157 = pnand %p155, %p156
    %p158 = pneg %p157
    // Predicated region
    $region25: #{conv_bn_relu_pallas.2} parent=5 // pred_check
      _
    $region26: #{conv_bn_relu_pallas.2} parent=5 // pred_check_branch
      %160 = sbr.rel (%p157) target = $region28
    $region27: #{conv_bn_relu_pallas.2} parent=5 // pred_region
      %s161 = ssub.s32 %s10, 1
      %p162 = scmp.lt.s32.totalorder %s19, 1
      %s163 = scalar_select %p162, %s19, 1
      %s164 = smul.addr %s163, 54
      %s165 = smul.addr %s164, 8
      %s166 = scalar_lea.vmem %s0, %s165
      %p167 = pneg %p48
      %p168 = pneg %p45
      %p169 = pneg %p69
      %p170 = pneg %p66
      %p171 = pneg %p97
      %p172 = pneg %p94
      %s173 = sadd.s32 %s19, %s20
      %s174 = smul.u32 32, %s173
      %p175 = scmp.lt.s32.totalorder %s174, 63
      %s176 = scalar_select %p175, %s174, 63
      %s177 = smul.addr %s176, 8
      %s178 = scalar_lea.vmem %s2, %s177
      %p179 = pneg %p125
      %p180 = pneg %p122
      %s181 = sadd.s32 %s19, %s20
      %p182 = scmp.lt.s32.totalorder %s181, 1
      %s183 = scalar_select %p182, %s181, 1
      %s184 = smul.addr %s183, 2
      %s185 = scalar_lea.vmem %s3, %s184
      %p186 = scmp.lt.s32.totalorder %s19, 1
      %s187 = scalar_select %p186, %s19, 1
      %s188 = smul.addr %s187, 54
      %s189 = smul.addr %s188, 8
      %s190 = scalar_lea.vmem %s0, %s189
      %s191 = sadd.s32 %s19, %s20
      %s192 = smul.u32 32, %s191
      %p193 = scmp.lt.s32.totalorder %s192, 63
      %s194 = scalar_select %p193, %s192, 63
      %s195 = smul.addr %s194, 8
      %s196 = scalar_lea.vmem %s2, %s195
      %s197 = sadd.s32 %s19, %s20
      %s198 = smul.u32 32, %s197
      %s199 = sadd.s32 %s19, %s20
      %p200 = scmp.lt.s32.totalorder %s199, 1
      %s201 = scalar_select %p200, %s199, 1
      %s202 = smul.addr %s201, 2
      %s203 = scalar_lea.vmem %s3, %s202
      %s204 = sadd.s32 %s19, %s20
      %s205 = smul.u32 %s20, 16
      %s206 = smul.u32 %s205, 24
      %s207 = scalar_lea.vmem %s190, %s206
      %v208 = vld [vmem:[%s207] sm:$0xff]
      %v209 = vld [vmem:[%s207 + $0x8] sm:$0xff]
      %v210 = vld [vmem:[%s207 + $0x10] sm:$0x3]
      %v211 = vld [vmem:[%s207 + $0x18] sm:$0xff]
      %v212 = vld [vmem:[%s207 + $0x20] sm:$0xff]
      %v213 = vld [vmem:[%s207 + $0x28] sm:$0x3]
      %v214 = vld [vmem:[%s207 + $0x30] sm:$0xff]
      %v215 = vld [vmem:[%s207 + $0x38] sm:$0xff]
      %v216 = vld [vmem:[%s207 + $0x40] sm:$0x3]
      %v217 = vld [vmem:[%s207 + $0x48] sm:$0xff]
      %v218 = vld [vmem:[%s207 + $0x50] sm:$0xff]
      %v219 = vld [vmem:[%s207 + $0x58] sm:$0x3]
      %v220 = vld [vmem:[%s207 + $0x60] sm:$0xff]
      %v221 = vld [vmem:[%s207 + $0x68] sm:$0xff]
      %v222 = vld [vmem:[%s207 + $0x70] sm:$0x3]
      %v223 = vld [vmem:[%s207 + $0x78] sm:$0xff]
      %v224 = vld [vmem:[%s207 + $0x80] sm:$0xff]
      %v225 = vld [vmem:[%s207 + $0x88] sm:$0x3]
      %v226 = vld [vmem:[%s207 + $0x90] sm:$0xff]
      %v227 = vld [vmem:[%s207 + $0x98] sm:$0xff]
      %v228 = vld [vmem:[%s207 + $0xa0] sm:$0x3]
      %v229 = vld [vmem:[%s207 + $0xa8] sm:$0xff]
      %v230 = vld [vmem:[%s207 + $0xb0] sm:$0xff]
      %v231 = vld [vmem:[%s207 + $0xb8] sm:$0x3]
      %v232 = vld [vmem:[%s207 + $0xc0] sm:$0xff]
      %v233 = vld [vmem:[%s207 + $0xc8] sm:$0xff]
      %v234 = vld [vmem:[%s207 + $0xd0] sm:$0x3]
      %v235 = vld [vmem:[%s207 + $0xd8] sm:$0xff]
      %v236 = vld [vmem:[%s207 + $0xe0] sm:$0xff]
      %v237 = vld [vmem:[%s207 + $0xe8] sm:$0x3]
      %v238 = vld [vmem:[%s207 + $0xf0] sm:$0xff]
      %v239 = vld [vmem:[%s207 + $0xf8] sm:$0xff]
      %v240 = vld [vmem:[%s207 + $0x100] sm:$0x3]
      %v241 = vld [vmem:[%s207 + $0x108] sm:$0xff]
      %v242 = vld [vmem:[%s207 + $0x110] sm:$0xff]
      %v243 = vld [vmem:[%s207 + $0x118] sm:$0x3]
      %v244 = vld [vmem:[%s207 + $0x120] sm:$0xff]
      %v245 = vld [vmem:[%s207 + $0x128] sm:$0xff]
      %v246 = vld [vmem:[%s207 + $0x130] sm:$0x3]
      %v247 = vld [vmem:[%s207 + $0x138] sm:$0xff]
      %v248 = vld [vmem:[%s207 + $0x140] sm:$0xff]
      %v249 = vld [vmem:[%s207 + $0x148] sm:$0x3]
      %v250 = vld [vmem:[%s207 + $0x150] sm:$0xff]
      %v251 = vld [vmem:[%s207 + $0x158] sm:$0xff]
      %v252 = vld [vmem:[%s207 + $0x160] sm:$0x3]
      %v253 = vld [vmem:[%s207 + $0x168] sm:$0xff]
      %v254 = vld [vmem:[%s207 + $0x170] sm:$0xff]
      %v255 = vld [vmem:[%s207 + $0x178] sm:$0x3]
      %v256 = vld [vmem:[%s207 + $0x180] sm:$0xff]
      %v257 = vld [vmem:[%s207 + $0x188] sm:$0xff]
      %v258 = vld [vmem:[%s207 + $0x190] sm:$0x3]
      %v259 = vld [vmem:[%s207 + $0x198] sm:$0xff]
      %v260 = vld [vmem:[%s207 + $0x1a0] sm:$0xff]
      %v261 = vld [vmem:[%s207 + $0x1a8] sm:$0x3]
      %vm310 = vcmask 1046528
      %v311 = vrot.slane %v208, 1
      %v312 = vrot.slane %v209, 1
      %v313 = vsel %vm310, %v311, %v312
      %v314 = vrot.slane %v210, 1
      %v315 = vsel %vm310, %v312, %v314
      %v316 = vrot.slane %v211, 1
      %v317 = vrot.slane %v212, 1
      %v318 = vsel %vm310, %v316, %v317
      %v319 = vrot.slane %v213, 1
      %v320 = vsel %vm310, %v317, %v319
      %v321 = vrot.slane %v214, 1
      %v322 = vrot.slane %v215, 1
      %v323 = vsel %vm310, %v321, %v322
      %v324 = vrot.slane %v216, 1
      %v325 = vsel %vm310, %v322, %v324
      %v326 = vrot.slane %v217, 1
      %v327 = vrot.slane %v218, 1
      %v328 = vsel %vm310, %v326, %v327
      %v329 = vrot.slane %v219, 1
      %v330 = vsel %vm310, %v327, %v329
      %v331 = vrot.slane %v220, 1
      %v332 = vrot.slane %v221, 1
      %v333 = vsel %vm310, %v331, %v332
      %v334 = vrot.slane %v222, 1
      %v335 = vsel %vm310, %v332, %v334
      %v336 = vrot.slane %v223, 1
      %v337 = vrot.slane %v224, 1
      %v338 = vsel %vm310, %v336, %v337
      %v339 = vrot.slane %v225, 1
      %v340 = vsel %vm310, %v337, %v339
      %v341 = vrot.slane %v226, 1
      %v342 = vrot.slane %v227, 1
      %v343 = vsel %vm310, %v341, %v342
      %v344 = vrot.slane %v228, 1
      %v345 = vsel %vm310, %v342, %v344
      %v346 = vrot.slane %v229, 1
      %v347 = vrot.slane %v230, 1
      %v348 = vsel %vm310, %v346, %v347
      %v349 = vrot.slane %v231, 1
      %v350 = vsel %vm310, %v347, %v349
      %v351 = vrot.slane %v232, 1
      %v352 = vrot.slane %v233, 1
      %v353 = vsel %vm310, %v351, %v352
      %v354 = vrot.slane %v234, 1
      %v355 = vsel %vm310, %v352, %v354
      %v356 = vrot.slane %v235, 1
      %v357 = vrot.slane %v236, 1
      %v358 = vsel %vm310, %v356, %v357
      %v359 = vrot.slane %v237, 1
      %v360 = vsel %vm310, %v357, %v359
      %v361 = vrot.slane %v238, 1
      %v362 = vrot.slane %v239, 1
      %v363 = vsel %vm310, %v361, %v362
      %v364 = vrot.slane %v240, 1
      %v365 = vsel %vm310, %v362, %v364
      %v366 = vrot.slane %v241, 1
      %v367 = vrot.slane %v242, 1
      %v368 = vsel %vm310, %v366, %v367
      %v369 = vrot.slane %v243, 1
      %v370 = vsel %vm310, %v367, %v369
      %v371 = vrot.slane %v244, 1
      %v372 = vrot.slane %v245, 1
      %v373 = vsel %vm310, %v371, %v372
      %v374 = vrot.slane %v246, 1
      %v375 = vsel %vm310, %v372, %v374
      %v376 = vrot.slane %v247, 1
      %v377 = vrot.slane %v248, 1
      %v378 = vsel %vm310, %v376, %v377
      %v379 = vrot.slane %v249, 1
      %v380 = vsel %vm310, %v377, %v379
      %v381 = vrot.slane %v250, 1
      %v382 = vrot.slane %v251, 1
      %v383 = vsel %vm310, %v381, %v382
      %v384 = vrot.slane %v252, 1
      %v385 = vsel %vm310, %v382, %v384
      %v386 = vrot.slane %v253, 1
      %v387 = vrot.slane %v254, 1
      %v388 = vsel %vm310, %v386, %v387
      %v389 = vrot.slane %v255, 1
      %v390 = vsel %vm310, %v387, %v389
      %vm391 = vcmask 1045504
      %v392 = vrot.slane %v208, 2
      %v393 = vrot.slane %v209, 2
      %v394 = vsel %vm391, %v392, %v393
      %v395 = vrot.slane %v210, 2
      %v396 = vsel %vm391, %v393, %v395
      %v397 = vrot.slane %v211, 2
      %v398 = vrot.slane %v212, 2
      %v399 = vsel %vm391, %v397, %v398
      %v400 = vrot.slane %v213, 2
      %v401 = vsel %vm391, %v398, %v400
      %v402 = vrot.slane %v214, 2
      %v403 = vrot.slane %v215, 2
      %v404 = vsel %vm391, %v402, %v403
      %v405 = vrot.slane %v216, 2
      %v406 = vsel %vm391, %v403, %v405
      %v407 = vrot.slane %v217, 2
      %v408 = vrot.slane %v218, 2
      %v409 = vsel %vm391, %v407, %v408
      %v410 = vrot.slane %v219, 2
      %v411 = vsel %vm391, %v408, %v410
      %v412 = vrot.slane %v220, 2
      %v413 = vrot.slane %v221, 2
      %v414 = vsel %vm391, %v412, %v413
      %v415 = vrot.slane %v222, 2
      %v416 = vsel %vm391, %v413, %v415
      %v417 = vrot.slane %v223, 2
      %v418 = vrot.slane %v224, 2
      %v419 = vsel %vm391, %v417, %v418
      %v420 = vrot.slane %v225, 2
      %v421 = vsel %vm391, %v418, %v420
      %v422 = vrot.slane %v226, 2
      %v423 = vrot.slane %v227, 2
      %v424 = vsel %vm391, %v422, %v423
      %v425 = vrot.slane %v228, 2
      %v426 = vsel %vm391, %v423, %v425
      %v427 = vrot.slane %v229, 2
      %v428 = vrot.slane %v230, 2
      %v429 = vsel %vm391, %v427, %v428
      %v430 = vrot.slane %v231, 2
      %v431 = vsel %vm391, %v428, %v430
      %v432 = vrot.slane %v232, 2
      %v433 = vrot.slane %v233, 2
      %v434 = vsel %vm391, %v432, %v433
      %v435 = vrot.slane %v234, 2
      %v436 = vsel %vm391, %v433, %v435
      %v437 = vrot.slane %v235, 2
      %v438 = vrot.slane %v236, 2
      %v439 = vsel %vm391, %v437, %v438
      %v440 = vrot.slane %v237, 2
      %v441 = vsel %vm391, %v438, %v440
      %v442 = vrot.slane %v238, 2
      %v443 = vrot.slane %v239, 2
      %v444 = vsel %vm391, %v442, %v443
      %v445 = vrot.slane %v240, 2
      %v446 = vsel %vm391, %v443, %v445
      %v447 = vrot.slane %v241, 2
      %v448 = vrot.slane %v242, 2
      %v449 = vsel %vm391, %v447, %v448
      %v450 = vrot.slane %v243, 2
      %v451 = vsel %vm391, %v448, %v450
      %v452 = vrot.slane %v244, 2
      %v453 = vrot.slane %v245, 2
      %v454 = vsel %vm391, %v452, %v453
      %v455 = vrot.slane %v246, 2
      %v456 = vsel %vm391, %v453, %v455
      %v457 = vrot.slane %v247, 2
      %v458 = vrot.slane %v248, 2
      %v459 = vsel %vm391, %v457, %v458
      %v460 = vrot.slane %v249, 2
      %v461 = vsel %vm391, %v458, %v460
      %v462 = vrot.slane %v250, 2
      %v463 = vrot.slane %v251, 2
      %v464 = vsel %vm391, %v462, %v463
      %v465 = vrot.slane %v252, 2
      %v466 = vsel %vm391, %v463, %v465
      %v467 = vrot.slane %v253, 2
      %v468 = vrot.slane %v254, 2
      %v469 = vsel %vm391, %v467, %v468
      %v470 = vrot.slane %v255, 2
      %v471 = vsel %vm391, %v468, %v470
      %v475 = vrot.slane %v256, 1
      %v476 = vrot.slane %v257, 1
      %v477 = vsel %vm310, %v475, %v476
      %v478 = vrot.slane %v258, 1
      %v479 = vsel %vm310, %v476, %v478
      %v480 = vrot.slane %v256, 2
      %v481 = vrot.slane %v257, 2
      %v482 = vsel %vm391, %v480, %v481
      %v483 = vrot.slane %v258, 2
      %v484 = vsel %vm391, %v481, %v483
      %v488 = vrot.slane %v259, 1
      %v489 = vrot.slane %v260, 1
      %v490 = vsel %vm310, %v488, %v489
      %v491 = vrot.slane %v261, 1
      %v492 = vsel %vm310, %v489, %v491
      %v493 = vrot.slane %v259, 2
      %v494 = vrot.slane %v260, 2
      %v495 = vsel %vm391, %v493, %v494
      %v496 = vrot.slane %v261, 2
      %v497 = vsel %vm391, %v494, %v496
      %498 = vrot.lane.b32.xlu0 %v313, 4
      %v499 = vpop.permute.xlu0 %498
      %500 = vrot.lane.b32.xlu0 %v315, 4
      %v501 = vpop.permute.xlu0 %500
      %502 = vrot.lane.b32.xlu0 %v318, 4
      %v503 = vpop.permute.xlu0 %502
      %504 = vrot.lane.b32.xlu0 %v320, 4
      %v505 = vpop.permute.xlu0 %504
      %506 = vrot.lane.b32.xlu0 %v323, 4
      %v507 = vpop.permute.xlu0 %506
      %508 = vrot.lane.b32.xlu0 %v325, 4
      %v509 = vpop.permute.xlu0 %508
      %510 = vrot.lane.b32.xlu0 %v328, 4
      %v511 = vpop.permute.xlu0 %510
      %512 = vrot.lane.b32.xlu0 %v330, 4
      %v513 = vpop.permute.xlu0 %512
      %514 = vrot.lane.b32.xlu0 %v333, 4
      %v515 = vpop.permute.xlu0 %514
      %516 = vrot.lane.b32.xlu0 %v335, 4
      %v517 = vpop.permute.xlu0 %516
      %518 = vrot.lane.b32.xlu0 %v338, 4
      %v519 = vpop.permute.xlu0 %518
      %520 = vrot.lane.b32.xlu0 %v340, 4
      %v521 = vpop.permute.xlu0 %520
      %522 = vrot.lane.b32.xlu0 %v343, 4
      %v523 = vpop.permute.xlu0 %522
      %524 = vrot.lane.b32.xlu0 %v345, 4
      %v525 = vpop.permute.xlu0 %524
      %526 = vrot.lane.b32.xlu0 %v348, 4
      %v527 = vpop.permute.xlu0 %526
      %528 = vrot.lane.b32.xlu0 %v350, 4
      %v529 = vpop.permute.xlu0 %528
      %530 = vrot.lane.b32.xlu0 %v353, 4
      %v531 = vpop.permute.xlu0 %530
      %532 = vrot.lane.b32.xlu0 %v355, 4
      %v533 = vpop.permute.xlu0 %532
      %534 = vrot.lane.b32.xlu0 %v358, 4
      %v535 = vpop.permute.xlu0 %534
      %536 = vrot.lane.b32.xlu0 %v360, 4
      %v537 = vpop.permute.xlu0 %536
      %538 = vrot.lane.b32.xlu0 %v363, 4
      %v539 = vpop.permute.xlu0 %538
      %540 = vrot.lane.b32.xlu0 %v365, 4
      %v541 = vpop.permute.xlu0 %540
      %542 = vrot.lane.b32.xlu0 %v368, 4
      %v543 = vpop.permute.xlu0 %542
      %544 = vrot.lane.b32.xlu0 %v370, 4
      %v545 = vpop.permute.xlu0 %544
      %546 = vrot.lane.b32.xlu0 %v373, 4
      %v547 = vpop.permute.xlu0 %546
      %548 = vrot.lane.b32.xlu0 %v375, 4
      %v549 = vpop.permute.xlu0 %548
      %550 = vrot.lane.b32.xlu0 %v378, 4
      %v551 = vpop.permute.xlu0 %550
      %552 = vrot.lane.b32.xlu0 %v380, 4
      %v553 = vpop.permute.xlu0 %552
      %554 = vrot.lane.b32.xlu0 %v383, 4
      %v555 = vpop.permute.xlu0 %554
      %556 = vrot.lane.b32.xlu0 %v385, 4
      %v557 = vpop.permute.xlu0 %556
      %558 = vrot.lane.b32.xlu0 %v388, 4
      %v559 = vpop.permute.xlu0 %558
      %560 = vrot.lane.b32.xlu0 %v390, 4
      %v561 = vpop.permute.xlu0 %560
      %594 = vrot.lane.b32.xlu0 %v394, 8
      %v595 = vpop.permute.xlu0 %594
      %596 = vrot.lane.b32.xlu0 %v396, 8
      %v597 = vpop.permute.xlu0 %596
      %598 = vrot.lane.b32.xlu0 %v399, 8
      %v599 = vpop.permute.xlu0 %598
      %600 = vrot.lane.b32.xlu0 %v401, 8
      %v601 = vpop.permute.xlu0 %600
      %602 = vrot.lane.b32.xlu0 %v404, 8
      %v603 = vpop.permute.xlu0 %602
      %604 = vrot.lane.b32.xlu0 %v406, 8
      %v605 = vpop.permute.xlu0 %604
      %606 = vrot.lane.b32.xlu0 %v409, 8
      %v607 = vpop.permute.xlu0 %606
      %608 = vrot.lane.b32.xlu0 %v411, 8
      %v609 = vpop.permute.xlu0 %608
      %610 = vrot.lane.b32.xlu0 %v414, 8
      %v611 = vpop.permute.xlu0 %610
      %612 = vrot.lane.b32.xlu0 %v416, 8
      %v613 = vpop.permute.xlu0 %612
      %614 = vrot.lane.b32.xlu0 %v419, 8
      %v615 = vpop.permute.xlu0 %614
      %616 = vrot.lane.b32.xlu0 %v421, 8
      %v617 = vpop.permute.xlu0 %616
      %618 = vrot.lane.b32.xlu0 %v424, 8
      %v619 = vpop.permute.xlu0 %618
      %620 = vrot.lane.b32.xlu0 %v426, 8
      %v621 = vpop.permute.xlu0 %620
      %622 = vrot.lane.b32.xlu0 %v429, 8
      %v623 = vpop.permute.xlu0 %622
      %624 = vrot.lane.b32.xlu0 %v431, 8
      %v625 = vpop.permute.xlu0 %624
      %626 = vrot.lane.b32.xlu0 %v434, 8
      %v627 = vpop.permute.xlu0 %626
      %628 = vrot.lane.b32.xlu0 %v436, 8
      %v629 = vpop.permute.xlu0 %628
      %630 = vrot.lane.b32.xlu0 %v439, 8
      %v631 = vpop.permute.xlu0 %630
      %632 = vrot.lane.b32.xlu0 %v441, 8
      %v633 = vpop.permute.xlu0 %632
      %634 = vrot.lane.b32.xlu0 %v444, 8
      %v635 = vpop.permute.xlu0 %634
      %636 = vrot.lane.b32.xlu0 %v446, 8
      %v637 = vpop.permute.xlu0 %636
      %638 = vrot.lane.b32.xlu0 %v449, 8
      %v639 = vpop.permute.xlu0 %638
      %640 = vrot.lane.b32.xlu0 %v451, 8
      %v641 = vpop.permute.xlu0 %640
      %642 = vrot.lane.b32.xlu0 %v454, 8
      %v643 = vpop.permute.xlu0 %642
      %644 = vrot.lane.b32.xlu0 %v456, 8
      %v645 = vpop.permute.xlu0 %644
      %646 = vrot.lane.b32.xlu0 %v459, 8
      %v647 = vpop.permute.xlu0 %646
      %648 = vrot.lane.b32.xlu0 %v461, 8
      %v649 = vpop.permute.xlu0 %648
      %650 = vrot.lane.b32.xlu0 %v464, 8
      %v651 = vpop.permute.xlu0 %650
      %652 = vrot.lane.b32.xlu0 %v466, 8
      %v653 = vpop.permute.xlu0 %652
      %654 = vrot.lane.b32.xlu0 %v469, 8
      %v655 = vpop.permute.xlu0 %654
      %656 = vrot.lane.b32.xlu0 %v471, 8
      %v657 = vpop.permute.xlu0 %656
      %690 = vrot.lane.b32.xlu0 %v211, 12
      %v691 = vpop.permute.xlu0 %690
      %692 = vrot.lane.b32.xlu0 %v212, 12
      %v693 = vpop.permute.xlu0 %692
      %694 = vrot.lane.b32.xlu0 %v214, 12
      %v695 = vpop.permute.xlu0 %694
      %696 = vrot.lane.b32.xlu0 %v215, 12
      %v697 = vpop.permute.xlu0 %696
      %698 = vrot.lane.b32.xlu0 %v217, 12
      %v699 = vpop.permute.xlu0 %698
      %700 = vrot.lane.b32.xlu0 %v218, 12
      %v701 = vpop.permute.xlu0 %700
      %702 = vrot.lane.b32.xlu0 %v220, 12
      %v703 = vpop.permute.xlu0 %702
      %704 = vrot.lane.b32.xlu0 %v221, 12
      %v705 = vpop.permute.xlu0 %704
      %706 = vrot.lane.b32.xlu0 %v223, 12
      %v707 = vpop.permute.xlu0 %706
      %708 = vrot.lane.b32.xlu0 %v224, 12
      %v709 = vpop.permute.xlu0 %708
      %710 = vrot.lane.b32.xlu0 %v226, 12
      %v711 = vpop.permute.xlu0 %710
      %712 = vrot.lane.b32.xlu0 %v227, 12
      %v713 = vpop.permute.xlu0 %712
      %714 = vrot.lane.b32.xlu0 %v229, 12
      %v715 = vpop.permute.xlu0 %714
      %716 = vrot.lane.b32.xlu0 %v230, 12
      %v717 = vpop.permute.xlu0 %716
      %718 = vrot.lane.b32.xlu0 %v232, 12
      %v719 = vpop.permute.xlu0 %718
      %720 = vrot.lane.b32.xlu0 %v233, 12
      %v721 = vpop.permute.xlu0 %720
      %722 = vrot.lane.b32.xlu0 %v235, 12
      %v723 = vpop.permute.xlu0 %722
      %724 = vrot.lane.b32.xlu0 %v236, 12
      %v725 = vpop.permute.xlu0 %724
      %726 = vrot.lane.b32.xlu0 %v238, 12
      %v727 = vpop.permute.xlu0 %726
      %728 = vrot.lane.b32.xlu0 %v239, 12
      %v729 = vpop.permute.xlu0 %728
      %730 = vrot.lane.b32.xlu0 %v241, 12
      %v731 = vpop.permute.xlu0 %730
      %732 = vrot.lane.b32.xlu0 %v242, 12
      %v733 = vpop.permute.xlu0 %732
      %734 = vrot.lane.b32.xlu0 %v244, 12
      %v735 = vpop.permute.xlu0 %734
      %736 = vrot.lane.b32.xlu0 %v245, 12
      %v737 = vpop.permute.xlu0 %736
      %738 = vrot.lane.b32.xlu0 %v247, 12
      %v739 = vpop.permute.xlu0 %738
      %740 = vrot.lane.b32.xlu0 %v248, 12
      %v741 = vpop.permute.xlu0 %740
      %742 = vrot.lane.b32.xlu0 %v250, 12
      %v743 = vpop.permute.xlu0 %742
      %744 = vrot.lane.b32.xlu0 %v251, 12
      %v745 = vpop.permute.xlu0 %744
      %746 = vrot.lane.b32.xlu0 %v253, 12
      %v747 = vpop.permute.xlu0 %746
      %748 = vrot.lane.b32.xlu0 %v254, 12
      %v749 = vpop.permute.xlu0 %748
      %750 = vrot.lane.b32.xlu0 %v256, 12
      %v751 = vpop.permute.xlu0 %750
      %752 = vrot.lane.b32.xlu0 %v257, 12
      %v753 = vpop.permute.xlu0 %752
      %786 = vrot.lane.b32.xlu0 %v318, 16
      %v787 = vpop.permute.xlu0 %786
      %788 = vrot.lane.b32.xlu0 %v320, 16
      %v789 = vpop.permute.xlu0 %788
      %790 = vrot.lane.b32.xlu0 %v323, 16
      %v791 = vpop.permute.xlu0 %790
      %792 = vrot.lane.b32.xlu0 %v325, 16
      %v793 = vpop.permute.xlu0 %792
      %794 = vrot.lane.b32.xlu0 %v328, 16
      %v795 = vpop.permute.xlu0 %794
      %796 = vrot.lane.b32.xlu0 %v330, 16
      %v797 = vpop.permute.xlu0 %796
      %798 = vrot.lane.b32.xlu0 %v333, 16
      %v799 = vpop.permute.xlu0 %798
      %800 = vrot.lane.b32.xlu0 %v335, 16
      %v801 = vpop.permute.xlu0 %800
      %802 = vrot.lane.b32.xlu0 %v338, 16
      %v803 = vpop.permute.xlu0 %802
      %804 = vrot.lane.b32.xlu0 %v340, 16
      %v805 = vpop.permute.xlu0 %804
      %806 = vrot.lane.b32.xlu0 %v343, 16
      %v807 = vpop.permute.xlu0 %806
      %808 = vrot.lane.b32.xlu0 %v345, 16
      %v809 = vpop.permute.xlu0 %808
      %810 = vrot.lane.b32.xlu0 %v348, 16
      %v811 = vpop.permute.xlu0 %810
      %812 = vrot.lane.b32.xlu0 %v350, 16
      %v813 = vpop.permute.xlu0 %812
      %814 = vrot.lane.b32.xlu0 %v353, 16
      %v815 = vpop.permute.xlu0 %814
      %816 = vrot.lane.b32.xlu0 %v355, 16
      %v817 = vpop.permute.xlu0 %816
      %818 = vrot.lane.b32.xlu0 %v358, 16
      %v819 = vpop.permute.xlu0 %818
      %820 = vrot.lane.b32.xlu0 %v360, 16
      %v821 = vpop.permute.xlu0 %820
      %822 = vrot.lane.b32.xlu0 %v363, 16
      %v823 = vpop.permute.xlu0 %822
      %824 = vrot.lane.b32.xlu0 %v365, 16
      %v825 = vpop.permute.xlu0 %824
      %826 = vrot.lane.b32.xlu0 %v368, 16
      %v827 = vpop.permute.xlu0 %826
      %828 = vrot.lane.b32.xlu0 %v370, 16
      %v829 = vpop.permute.xlu0 %828
      %830 = vrot.lane.b32.xlu0 %v373, 16
      %v831 = vpop.permute.xlu0 %830
      %832 = vrot.lane.b32.xlu0 %v375, 16
      %v833 = vpop.permute.xlu0 %832
      %834 = vrot.lane.b32.xlu0 %v378, 16
      %v835 = vpop.permute.xlu0 %834
      %836 = vrot.lane.b32.xlu0 %v380, 16
      %v837 = vpop.permute.xlu0 %836
      %838 = vrot.lane.b32.xlu0 %v383, 16
      %v839 = vpop.permute.xlu0 %838
      %840 = vrot.lane.b32.xlu0 %v385, 16
      %v841 = vpop.permute.xlu0 %840
      %842 = vrot.lane.b32.xlu0 %v388, 16
      %v843 = vpop.permute.xlu0 %842
      %844 = vrot.lane.b32.xlu0 %v390, 16
      %v845 = vpop.permute.xlu0 %844
      %846 = vrot.lane.b32.xlu0 %v477, 16
      %v847 = vpop.permute.xlu0 %846
      %848 = vrot.lane.b32.xlu0 %v479, 16
      %v849 = vpop.permute.xlu0 %848
      %882 = vrot.lane.b32.xlu0 %v399, 20
      %v883 = vpop.permute.xlu0 %882
      %884 = vrot.lane.b32.xlu0 %v401, 20
      %v885 = vpop.permute.xlu0 %884
      %886 = vrot.lane.b32.xlu0 %v404, 20
      %v887 = vpop.permute.xlu0 %886
      %888 = vrot.lane.b32.xlu0 %v406, 20
      %v889 = vpop.permute.xlu0 %888
      %890 = vrot.lane.b32.xlu0 %v409, 20
      %v891 = vpop.permute.xlu0 %890
      %892 = vrot.lane.b32.xlu0 %v411, 20
      %v893 = vpop.permute.xlu0 %892
      %894 = vrot.lane.b32.xlu0 %v414, 20
      %v895 = vpop.permute.xlu0 %894
      %896 = vrot.lane.b32.xlu0 %v416, 20
      %v897 = vpop.permute.xlu0 %896
      %898 = vrot.lane.b32.xlu0 %v419, 20
      %v899 = vpop.permute.xlu0 %898
      %900 = vrot.lane.b32.xlu0 %v421, 20
      %v901 = vpop.permute.xlu0 %900
      %902 = vrot.lane.b32.xlu0 %v424, 20
      %v903 = vpop.permute.xlu0 %902
      %904 = vrot.lane.b32.xlu0 %v426, 20
      %v905 = vpop.permute.xlu0 %904
      %906 = vrot.lane.b32.xlu0 %v429, 20
      %v907 = vpop.permute.xlu0 %906
      %908 = vrot.lane.b32.xlu0 %v431, 20
      %v909 = vpop.permute.xlu0 %908
      %910 = vrot.lane.b32.xlu0 %v434, 20
      %v911 = vpop.permute.xlu0 %910
      %912 = vrot.lane.b32.xlu0 %v436, 20
      %v913 = vpop.permute.xlu0 %912
      %914 = vrot.lane.b32.xlu0 %v439, 20
      %v915 = vpop.permute.xlu0 %914
      %916 = vrot.lane.b32.xlu0 %v441, 20
      %v917 = vpop.permute.xlu0 %916
      %918 = vrot.lane.b32.xlu0 %v444, 20
      %v919 = vpop.permute.xlu0 %918
      %920 = vrot.lane.b32.xlu0 %v446, 20
      %v921 = vpop.permute.xlu0 %920
      %922 = vrot.lane.b32.xlu0 %v449, 20
      %v923 = vpop.permute.xlu0 %922
      %924 = vrot.lane.b32.xlu0 %v451, 20
      %v925 = vpop.permute.xlu0 %924
      %926 = vrot.lane.b32.xlu0 %v454, 20
      %v927 = vpop.permute.xlu0 %926
      %928 = vrot.lane.b32.xlu0 %v456, 20
      %v929 = vpop.permute.xlu0 %928
      %930 = vrot.lane.b32.xlu0 %v459, 20
      %v931 = vpop.permute.xlu0 %930
      %932 = vrot.lane.b32.xlu0 %v461, 20
      %v933 = vpop.permute.xlu0 %932
      %934 = vrot.lane.b32.xlu0 %v464, 20
      %v935 = vpop.permute.xlu0 %934
      %936 = vrot.lane.b32.xlu0 %v466, 20
      %v937 = vpop.permute.xlu0 %936
      %938 = vrot.lane.b32.xlu0 %v469, 20
      %v939 = vpop.permute.xlu0 %938
      %940 = vrot.lane.b32.xlu0 %v471, 20
      %v941 = vpop.permute.xlu0 %940
      %942 = vrot.lane.b32.xlu0 %v482, 20
      %v943 = vpop.permute.xlu0 %942
      %944 = vrot.lane.b32.xlu0 %v484, 20
      %v945 = vpop.permute.xlu0 %944
      %978 = vrot.lane.b32.xlu0 %v214, 24
      %v979 = vpop.permute.xlu0 %978
      %980 = vrot.lane.b32.xlu0 %v215, 24
      %v981 = vpop.permute.xlu0 %980
      %982 = vrot.lane.b32.xlu0 %v217, 24
      %v983 = vpop.permute.xlu0 %982
      %984 = vrot.lane.b32.xlu0 %v218, 24
      %v985 = vpop.permute.xlu0 %984
      %986 = vrot.lane.b32.xlu0 %v220, 24
      %v987 = vpop.permute.xlu0 %986
      %988 = vrot.lane.b32.xlu0 %v221, 24
      %v989 = vpop.permute.xlu0 %988
      %990 = vrot.lane.b32.xlu0 %v223, 24
      %v991 = vpop.permute.xlu0 %990
      %992 = vrot.lane.b32.xlu0 %v224, 24
      %v993 = vpop.permute.xlu0 %992
      %994 = vrot.lane.b32.xlu0 %v226, 24
      %v995 = vpop.permute.xlu0 %994
      %996 = vrot.lane.b32.xlu0 %v227, 24
      %v997 = vpop.permute.xlu0 %996
      %998 = vrot.lane.b32.xlu0 %v229, 24
      %v999 = vpop.permute.xlu0 %998
      %1000 = vrot.lane.b32.xlu0 %v230, 24
      %v1001 = vpop.permute.xlu0 %1000
      %1002 = vrot.lane.b32.xlu0 %v232, 24
      %v1003 = vpop.permute.xlu0 %1002
      %1004 = vrot.lane.b32.xlu0 %v233, 24
      %v1005 = vpop.permute.xlu0 %1004
      %1006 = vrot.lane.b32.xlu0 %v235, 24
      %v1007 = vpop.permute.xlu0 %1006
      %1008 = vrot.lane.b32.xlu0 %v236, 24
      %v1009 = vpop.permute.xlu0 %1008
      %1010 = vrot.lane.b32.xlu0 %v238, 24
      %v1011 = vpop.permute.xlu0 %1010
      %1012 = vrot.lane.b32.xlu0 %v239, 24
      %v1013 = vpop.permute.xlu0 %1012
      %1014 = vrot.lane.b32.xlu0 %v241, 24
      %v1015 = vpop.permute.xlu0 %1014
      %1016 = vrot.lane.b32.xlu0 %v242, 24
      %v1017 = vpop.permute.xlu0 %1016
      %1018 = vrot.lane.b32.xlu0 %v244, 24
      %v1019 = vpop.permute.xlu0 %1018
      %1020 = vrot.lane.b32.xlu0 %v245, 24
      %v1021 = vpop.permute.xlu0 %1020
      %1022 = vrot.lane.b32.xlu0 %v247, 24
      %v1023 = vpop.permute.xlu0 %1022
      %1024 = vrot.lane.b32.xlu0 %v248, 24
      %v1025 = vpop.permute.xlu0 %1024
      %1026 = vrot.lane.b32.xlu0 %v250, 24
      %v1027 = vpop.permute.xlu0 %1026
      %1028 = vrot.lane.b32.xlu0 %v251, 24
      %v1029 = vpop.permute.xlu0 %1028
      %1030 = vrot.lane.b32.xlu0 %v253, 24
      %v1031 = vpop.permute.xlu0 %1030
      %1032 = vrot.lane.b32.xlu0 %v254, 24
      %v1033 = vpop.permute.xlu0 %1032
      %1034 = vrot.lane.b32.xlu0 %v256, 24
      %v1035 = vpop.permute.xlu0 %1034
      %1036 = vrot.lane.b32.xlu0 %v257, 24
      %v1037 = vpop.permute.xlu0 %1036
      %1038 = vrot.lane.b32.xlu0 %v259, 24
      %v1039 = vpop.permute.xlu0 %1038
      %1040 = vrot.lane.b32.xlu0 %v260, 24
      %v1041 = vpop.permute.xlu0 %1040
      %1074 = vrot.lane.b32.xlu0 %v323, 28
      %v1075 = vpop.permute.xlu0 %1074
      %1076 = vrot.lane.b32.xlu0 %v325, 28
      %v1077 = vpop.permute.xlu0 %1076
      %1078 = vrot.lane.b32.xlu0 %v328, 28
      %v1079 = vpop.permute.xlu0 %1078
      %1080 = vrot.lane.b32.xlu0 %v330, 28
      %v1081 = vpop.permute.xlu0 %1080
      %1082 = vrot.lane.b32.xlu0 %v333, 28
      %v1083 = vpop.permute.xlu0 %1082
      %1084 = vrot.lane.b32.xlu0 %v335, 28
      %v1085 = vpop.permute.xlu0 %1084
      %1086 = vrot.lane.b32.xlu0 %v338, 28
      %v1087 = vpop.permute.xlu0 %1086
      %1088 = vrot.lane.b32.xlu0 %v340, 28
      %v1089 = vpop.permute.xlu0 %1088
      %1090 = vrot.lane.b32.xlu0 %v343, 28
      %v1091 = vpop.permute.xlu0 %1090
      %1092 = vrot.lane.b32.xlu0 %v345, 28
      %v1093 = vpop.permute.xlu0 %1092
      %1094 = vrot.lane.b32.xlu0 %v348, 28
      %v1095 = vpop.permute.xlu0 %1094
      %1096 = vrot.lane.b32.xlu0 %v350, 28
      %v1097 = vpop.permute.xlu0 %1096
      %1098 = vrot.lane.b32.xlu0 %v353, 28
      %v1099 = vpop.permute.xlu0 %1098
      %1100 = vrot.lane.b32.xlu0 %v355, 28
      %v1101 = vpop.permute.xlu0 %1100
      %1102 = vrot.lane.b32.xlu0 %v358, 28
      %v1103 = vpop.permute.xlu0 %1102
      %1104 = vrot.lane.b32.xlu0 %v360, 28
      %v1105 = vpop.permute.xlu0 %1104
      %1106 = vrot.lane.b32.xlu0 %v363, 28
      %v1107 = vpop.permute.xlu0 %1106
      %1108 = vrot.lane.b32.xlu0 %v365, 28
      %v1109 = vpop.permute.xlu0 %1108
      %1110 = vrot.lane.b32.xlu0 %v368, 28
      %v1111 = vpop.permute.xlu0 %1110
      %1112 = vrot.lane.b32.xlu0 %v370, 28
      %v1113 = vpop.permute.xlu0 %1112
      %1114 = vrot.lane.b32.xlu0 %v373, 28
      %v1115 = vpop.permute.xlu0 %1114
      %1116 = vrot.lane.b32.xlu0 %v375, 28
      %v1117 = vpop.permute.xlu0 %1116
      %1118 = vrot.lane.b32.xlu0 %v378, 28
      %v1119 = vpop.permute.xlu0 %1118
      %1120 = vrot.lane.b32.xlu0 %v380, 28
      %v1121 = vpop.permute.xlu0 %1120
      %1122 = vrot.lane.b32.xlu0 %v383, 28
      %v1123 = vpop.permute.xlu0 %1122
      %1124 = vrot.lane.b32.xlu0 %v385, 28
      %v1125 = vpop.permute.xlu0 %1124
      %1126 = vrot.lane.b32.xlu0 %v388, 28
      %v1127 = vpop.permute.xlu0 %1126
      %1128 = vrot.lane.b32.xlu0 %v390, 28
      %v1129 = vpop.permute.xlu0 %1128
      %1130 = vrot.lane.b32.xlu0 %v477, 28
      %v1131 = vpop.permute.xlu0 %1130
      %1132 = vrot.lane.b32.xlu0 %v479, 28
      %v1133 = vpop.permute.xlu0 %1132
      %1134 = vrot.lane.b32.xlu0 %v490, 28
      %v1135 = vpop.permute.xlu0 %1134
      %1136 = vrot.lane.b32.xlu0 %v492, 28
      %v1137 = vpop.permute.xlu0 %1136
      %1170 = vrot.lane.b32.xlu0 %v404, 32
      %v1171 = vpop.permute.xlu0 %1170
      %1172 = vrot.lane.b32.xlu0 %v406, 32
      %v1173 = vpop.permute.xlu0 %1172
      %1174 = vrot.lane.b32.xlu0 %v409, 32
      %v1175 = vpop.permute.xlu0 %1174
      %1176 = vrot.lane.b32.xlu0 %v411, 32
      %v1177 = vpop.permute.xlu0 %1176
      %1178 = vrot.lane.b32.xlu0 %v414, 32
      %v1179 = vpop.permute.xlu0 %1178
      %1180 = vrot.lane.b32.xlu0 %v416, 32
      %v1181 = vpop.permute.xlu0 %1180
      %1182 = vrot.lane.b32.xlu0 %v419, 32
      %v1183 = vpop.permute.xlu0 %1182
      %1184 = vrot.lane.b32.xlu0 %v421, 32
      %v1185 = vpop.permute.xlu0 %1184
      %1186 = vrot.lane.b32.xlu0 %v424, 32
      %v1187 = vpop.permute.xlu0 %1186
      %1188 = vrot.lane.b32.xlu0 %v426, 32
      %v1189 = vpop.permute.xlu0 %1188
      %1190 = vrot.lane.b32.xlu0 %v429, 32
      %v1191 = vpop.permute.xlu0 %1190
      %1192 = vrot.lane.b32.xlu0 %v431, 32
      %v1193 = vpop.permute.xlu0 %1192
      %1194 = vrot.lane.b32.xlu0 %v434, 32
      %v1195 = vpop.permute.xlu0 %1194
      %1196 = vrot.lane.b32.xlu0 %v436, 32
      %v1197 = vpop.permute.xlu0 %1196
      %1198 = vrot.lane.b32.xlu0 %v439, 32
      %v1199 = vpop.permute.xlu0 %1198
      %1200 = vrot.lane.b32.xlu0 %v441, 32
      %v1201 = vpop.permute.xlu0 %1200
      %1202 = vrot.lane.b32.xlu0 %v444, 32
      %v1203 = vpop.permute.xlu0 %1202
      %1204 = vrot.lane.b32.xlu0 %v446, 32
      %v1205 = vpop.permute.xlu0 %1204
      %1206 = vrot.lane.b32.xlu0 %v449, 32
      %v1207 = vpop.permute.xlu0 %1206
      %1208 = vrot.lane.b32.xlu0 %v451, 32
      %v1209 = vpop.permute.xlu0 %1208
      %1210 = vrot.lane.b32.xlu0 %v454, 32
      %v1211 = vpop.permute.xlu0 %1210
      %1212 = vrot.lane.b32.xlu0 %v456, 32
      %v1213 = vpop.permute.xlu0 %1212
      %1214 = vrot.lane.b32.xlu0 %v459, 32
      %v1215 = vpop.permute.xlu0 %1214
      %1216 = vrot.lane.b32.xlu0 %v461, 32
      %v1217 = vpop.permute.xlu0 %1216
      %1218 = vrot.lane.b32.xlu0 %v464, 32
      %v1219 = vpop.permute.xlu0 %1218
      %1220 = vrot.lane.b32.xlu0 %v466, 32
      %v1221 = vpop.permute.xlu0 %1220
      %1222 = vrot.lane.b32.xlu0 %v469, 32
      %v1223 = vpop.permute.xlu0 %1222
      %1224 = vrot.lane.b32.xlu0 %v471, 32
      %v1225 = vpop.permute.xlu0 %1224
      %1226 = vrot.lane.b32.xlu0 %v482, 32
      %v1227 = vpop.permute.xlu0 %1226
      %1228 = vrot.lane.b32.xlu0 %v484, 32
      %v1229 = vpop.permute.xlu0 %1228
      %1230 = vrot.lane.b32.xlu0 %v495, 32
      %v1231 = vpop.permute.xlu0 %1230
      %1232 = vrot.lane.b32.xlu0 %v497, 32
      %v1233 = vpop.permute.xlu0 %1232
      %vm1266 = vcmask 31744
      %v1267 = vsel %vm1266, %v208, %v499
      %v1268 = vsel %vm1266, %v209, %v501
      %v1269 = vsel %vm1266, %v211, %v503
      %v1270 = vsel %vm1266, %v212, %v505
      %v1271 = vsel %vm1266, %v214, %v507
      %v1272 = vsel %vm1266, %v215, %v509
      %v1273 = vsel %vm1266, %v217, %v511
      %v1274 = vsel %vm1266, %v218, %v513
      %v1275 = vsel %vm1266, %v220, %v515
      %v1276 = vsel %vm1266, %v221, %v517
      %v1277 = vsel %vm1266, %v223, %v519
      %v1278 = vsel %vm1266, %v224, %v521
      %v1279 = vsel %vm1266, %v226, %v523
      %v1280 = vsel %vm1266, %v227, %v525
      %v1281 = vsel %vm1266, %v229, %v527
      %v1282 = vsel %vm1266, %v230, %v529
      %v1283 = vsel %vm1266, %v232, %v531
      %v1284 = vsel %vm1266, %v233, %v533
      %v1285 = vsel %vm1266, %v235, %v535
      %v1286 = vsel %vm1266, %v236, %v537
      %v1287 = vsel %vm1266, %v238, %v539
      %v1288 = vsel %vm1266, %v239, %v541
      %v1289 = vsel %vm1266, %v241, %v543
      %v1290 = vsel %vm1266, %v242, %v545
      %v1291 = vsel %vm1266, %v244, %v547
      %v1292 = vsel %vm1266, %v245, %v549
      %v1293 = vsel %vm1266, %v247, %v551
      %v1294 = vsel %vm1266, %v248, %v553
      %v1295 = vsel %vm1266, %v250, %v555
      %v1296 = vsel %vm1266, %v251, %v557
      %v1297 = vsel %vm1266, %v253, %v559
      %v1298 = vsel %vm1266, %v254, %v561
      %vm1299 = vcmask 64512
      %v1300 = vsel %vm1299, %v1267, %v595
      %v1301 = vsel %vm1299, %v1268, %v597
      %v1302 = vsel %vm1299, %v1269, %v599
      %v1303 = vsel %vm1299, %v1270, %v601
      %v1304 = vsel %vm1299, %v1271, %v603
      %v1305 = vsel %vm1299, %v1272, %v605
      %v1306 = vsel %vm1299, %v1273, %v607
      %v1307 = vsel %vm1299, %v1274, %v609
      %v1308 = vsel %vm1299, %v1275, %v611
      %v1309 = vsel %vm1299, %v1276, %v613
      %v1310 = vsel %vm1299, %v1277, %v615
      %v1311 = vsel %vm1299, %v1278, %v617
      %v1312 = vsel %vm1299, %v1279, %v619
      %v1313 = vsel %vm1299, %v1280, %v621
      %v1314 = vsel %vm1299, %v1281, %v623
      %v1315 = vsel %vm1299, %v1282, %v625
      %v1316 = vsel %vm1299, %v1283, %v627
      %v1317 = vsel %vm1299, %v1284, %v629
      %v1318 = vsel %vm1299, %v1285, %v631
      %v1319 = vsel %vm1299, %v1286, %v633
      %v1320 = vsel %vm1299, %v1287, %v635
      %v1321 = vsel %vm1299, %v1288, %v637
      %v1322 = vsel %vm1299, %v1289, %v639
      %v1323 = vsel %vm1299, %v1290, %v641
      %v1324 = vsel %vm1299, %v1291, %v643
      %v1325 = vsel %vm1299, %v1292, %v645
      %v1326 = vsel %vm1299, %v1293, %v647
      %v1327 = vsel %vm1299, %v1294, %v649
      %v1328 = vsel %vm1299, %v1295, %v651
      %v1329 = vsel %vm1299, %v1296, %v653
      %v1330 = vsel %vm1299, %v1297, %v655
      %v1331 = vsel %vm1299, %v1298, %v657
      %vm1332 = vcmask 97280
      %v1333 = vsel %vm1332, %v1300, %v691
      %v1334 = vsel %vm1332, %v1301, %v693
      %v1335 = vsel %vm1332, %v1302, %v695
      %v1336 = vsel %vm1332, %v1303, %v697
      %v1337 = vsel %vm1332, %v1304, %v699
      %v1338 = vsel %vm1332, %v1305, %v701
      %v1339 = vsel %vm1332, %v1306, %v703
      %v1340 = vsel %vm1332, %v1307, %v705
      %v1341 = vsel %vm1332, %v1308, %v707
      %v1342 = vsel %vm1332, %v1309, %v709
      %v1343 = vsel %vm1332, %v1310, %v711
      %v1344 = vsel %vm1332, %v1311, %v713
      %v1345 = vsel %vm1332, %v1312, %v715
      %v1346 = vsel %vm1332, %v1313, %v717
      %v1347 = vsel %vm1332, %v1314, %v719
      %v1348 = vsel %vm1332, %v1315, %v721
      %v1349 = vsel %vm1332, %v1316, %v723
      %v1350 = vsel %vm1332, %v1317, %v725
      %v1351 = vsel %vm1332, %v1318, %v727
      %v1352 = vsel %vm1332, %v1319, %v729
      %v1353 = vsel %vm1332, %v1320, %v731
      %v1354 = vsel %vm1332, %v1321, %v733
      %v1355 = vsel %vm1332, %v1322, %v735
      %v1356 = vsel %vm1332, %v1323, %v737
      %v1357 = vsel %vm1332, %v1324, %v739
      %v1358 = vsel %vm1332, %v1325, %v741
      %v1359 = vsel %vm1332, %v1326, %v743
      %v1360 = vsel %vm1332, %v1327, %v745
      %v1361 = vsel %vm1332, %v1328, %v747
      %v1362 = vsel %vm1332, %v1329, %v749
      %v1363 = vsel %vm1332, %v1330, %v751
      %v1364 = vsel %vm1332, %v1331, %v753
      %vm1365 = vcmask 130048
      %v1366 = vsel %vm1365, %v1333, %v787
      %v1367 = vsel %vm1365, %v1334, %v789
      %v1368 = vsel %vm1365, %v1335, %v791
      %v1369 = vsel %vm1365, %v1336, %v793
      %v1370 = vsel %vm1365, %v1337, %v795
      %v1371 = vsel %vm1365, %v1338, %v797
      %v1372 = vsel %vm1365, %v1339, %v799
      %v1373 = vsel %vm1365, %v1340, %v801
      %v1374 = vsel %vm1365, %v1341, %v803
      %v1375 = vsel %vm1365, %v1342, %v805
      %v1376 = vsel %vm1365, %v1343, %v807
      %v1377 = vsel %vm1365, %v1344, %v809
      %v1378 = vsel %vm1365, %v1345, %v811
      %v1379 = vsel %vm1365, %v1346, %v813
      %v1380 = vsel %vm1365, %v1347, %v815
      %v1381 = vsel %vm1365, %v1348, %v817
      %v1382 = vsel %vm1365, %v1349, %v819
      %v1383 = vsel %vm1365, %v1350, %v821
      %v1384 = vsel %vm1365, %v1351, %v823
      %v1385 = vsel %vm1365, %v1352, %v825
      %v1386 = vsel %vm1365, %v1353, %v827
      %v1387 = vsel %vm1365, %v1354, %v829
      %v1388 = vsel %vm1365, %v1355, %v831
      %v1389 = vsel %vm1365, %v1356, %v833
      %v1390 = vsel %vm1365, %v1357, %v835
      %v1391 = vsel %vm1365, %v1358, %v837
      %v1392 = vsel %vm1365, %v1359, %v839
      %v1393 = vsel %vm1365, %v1360, %v841
      %v1394 = vsel %vm1365, %v1361, %v843
      %v1395 = vsel %vm1365, %v1362, %v845
      %v1396 = vsel %vm1365, %v1363, %v847
      %v1397 = vsel %vm1365, %v1364, %v849
      %vm1398 = vcmask 162816
      %v1399 = vsel %vm1398, %v1366, %v883
      %v1400 = vsel %vm1398, %v1367, %v885
      %v1401 = vsel %vm1398, %v1368, %v887
      %v1402 = vsel %vm1398, %v1369, %v889
      %v1403 = vsel %vm1398, %v1370, %v891
      %v1404 = vsel %vm1398, %v1371, %v893
      %v1405 = vsel %vm1398, %v1372, %v895
      %v1406 = vsel %vm1398, %v1373, %v897
      %v1407 = vsel %vm1398, %v1374, %v899
      %v1408 = vsel %vm1398, %v1375, %v901
      %v1409 = vsel %vm1398, %v1376, %v903
      %v1410 = vsel %vm1398, %v1377, %v905
      %v1411 = vsel %vm1398, %v1378, %v907
      %v1412 = vsel %vm1398, %v1379, %v909
      %v1413 = vsel %vm1398, %v1380, %v911
      %v1414 = vsel %vm1398, %v1381, %v913
      %v1415 = vsel %vm1398, %v1382, %v915
      %v1416 = vsel %vm1398, %v1383, %v917
      %v1417 = vsel %vm1398, %v1384, %v919
      %v1418 = vsel %vm1398, %v1385, %v921
      %v1419 = vsel %vm1398, %v1386, %v923
      %v1420 = vsel %vm1398, %v1387, %v925
      %v1421 = vsel %vm1398, %v1388, %v927
      %v1422 = vsel %vm1398, %v1389, %v929
      %v1423 = vsel %vm1398, %v1390, %v931
      %v1424 = vsel %vm1398, %v1391, %v933
      %v1425 = vsel %vm1398, %v1392, %v935
      %v1426 = vsel %vm1398, %v1393, %v937
      %v1427 = vsel %vm1398, %v1394, %v939
      %v1428 = vsel %vm1398, %v1395, %v941
      %v1429 = vsel %vm1398, %v1396, %v943
      %v1430 = vsel %vm1398, %v1397, %v945
      %vm1431 = vcmask 195584
      %v1432 = vsel %vm1431, %v1399, %v979
      %v1433 = vsel %vm1431, %v1400, %v981
      %v1434 = vsel %vm1431, %v1401, %v983
      %v1435 = vsel %vm1431, %v1402, %v985
      %v1436 = vsel %vm1431, %v1403, %v987
      %v1437 = vsel %vm1431, %v1404, %v989
      %v1438 = vsel %vm1431, %v1405, %v991
      %v1439 = vsel %vm1431, %v1406, %v993
      %v1440 = vsel %vm1431, %v1407, %v995
      %v1441 = vsel %vm1431, %v1408, %v997
      %v1442 = vsel %vm1431, %v1409, %v999
      %v1443 = vsel %vm1431, %v1410, %v1001
      %v1444 = vsel %vm1431, %v1411, %v1003
      %v1445 = vsel %vm1431, %v1412, %v1005
      %v1446 = vsel %vm1431, %v1413, %v1007
      %v1447 = vsel %vm1431, %v1414, %v1009
      %v1448 = vsel %vm1431, %v1415, %v1011
      %v1449 = vsel %vm1431, %v1416, %v1013
      %v1450 = vsel %vm1431, %v1417, %v1015
      %v1451 = vsel %vm1431, %v1418, %v1017
      %v1452 = vsel %vm1431, %v1419, %v1019
      %v1453 = vsel %vm1431, %v1420, %v1021
      %v1454 = vsel %vm1431, %v1421, %v1023
      %v1455 = vsel %vm1431, %v1422, %v1025
      %v1456 = vsel %vm1431, %v1423, %v1027
      %v1457 = vsel %vm1431, %v1424, %v1029
      %v1458 = vsel %vm1431, %v1425, %v1031
      %v1459 = vsel %vm1431, %v1426, %v1033
      %v1460 = vsel %vm1431, %v1427, %v1035
      %v1461 = vsel %vm1431, %v1428, %v1037
      %v1462 = vsel %vm1431, %v1429, %v1039
      %v1463 = vsel %vm1431, %v1430, %v1041
      %vm1464 = vcmask 228352
      %v1465 = vsel %vm1464, %v1432, %v1075
      %v1466 = vsel %vm1464, %v1433, %v1077
      %v1467 = vsel %vm1464, %v1434, %v1079
      %v1468 = vsel %vm1464, %v1435, %v1081
      %v1469 = vsel %vm1464, %v1436, %v1083
      %v1470 = vsel %vm1464, %v1437, %v1085
      %v1471 = vsel %vm1464, %v1438, %v1087
      %v1472 = vsel %vm1464, %v1439, %v1089
      %v1473 = vsel %vm1464, %v1440, %v1091
      %v1474 = vsel %vm1464, %v1441, %v1093
      %v1475 = vsel %vm1464, %v1442, %v1095
      %v1476 = vsel %vm1464, %v1443, %v1097
      %v1477 = vsel %vm1464, %v1444, %v1099
      %v1478 = vsel %vm1464, %v1445, %v1101
      %v1479 = vsel %vm1464, %v1446, %v1103
      %v1480 = vsel %vm1464, %v1447, %v1105
      %v1481 = vsel %vm1464, %v1448, %v1107
      %v1482 = vsel %vm1464, %v1449, %v1109
      %v1483 = vsel %vm1464, %v1450, %v1111
      %v1484 = vsel %vm1464, %v1451, %v1113
      %v1485 = vsel %vm1464, %v1452, %v1115
      %v1486 = vsel %vm1464, %v1453, %v1117
      %v1487 = vsel %vm1464, %v1454, %v1119
      %v1488 = vsel %vm1464, %v1455, %v1121
      %v1489 = vsel %vm1464, %v1456, %v1123
      %v1490 = vsel %vm1464, %v1457, %v1125
      %v1491 = vsel %vm1464, %v1458, %v1127
      %v1492 = vsel %vm1464, %v1459, %v1129
      %v1493 = vsel %vm1464, %v1460, %v1131
      %v1494 = vsel %vm1464, %v1461, %v1133
      %v1495 = vsel %vm1464, %v1462, %v1135
      %v1496 = vsel %vm1464, %v1463, %v1137
      %vm1497 = vcmask 261120
      %v1498 = vsel %vm1497, %v1465, %v1171
      %v1499 = vsel %vm1497, %v1466, %v1173
      %v1500 = vsel %vm1497, %v1467, %v1175
      %v1501 = vsel %vm1497, %v1468, %v1177
      %v1502 = vsel %vm1497, %v1469, %v1179
      %v1503 = vsel %vm1497, %v1470, %v1181
      %v1504 = vsel %vm1497, %v1471, %v1183
      %v1505 = vsel %vm1497, %v1472, %v1185
      %v1506 = vsel %vm1497, %v1473, %v1187
      %v1507 = vsel %vm1497, %v1474, %v1189
      %v1508 = vsel %vm1497, %v1475, %v1191
      %v1509 = vsel %vm1497, %v1476, %v1193
      %v1510 = vsel %vm1497, %v1477, %v1195
      %v1511 = vsel %vm1497, %v1478, %v1197
      %v1512 = vsel %vm1497, %v1479, %v1199
      %v1513 = vsel %vm1497, %v1480, %v1201
      %v1514 = vsel %vm1497, %v1481, %v1203
      %v1515 = vsel %vm1497, %v1482, %v1205
      %v1516 = vsel %vm1497, %v1483, %v1207
      %v1517 = vsel %vm1497, %v1484, %v1209
      %v1518 = vsel %vm1497, %v1485, %v1211
      %v1519 = vsel %vm1497, %v1486, %v1213
      %v1520 = vsel %vm1497, %v1487, %v1215
      %v1521 = vsel %vm1497, %v1488, %v1217
      %v1522 = vsel %vm1497, %v1489, %v1219
      %v1523 = vsel %vm1497, %v1490, %v1221
      %v1524 = vsel %vm1497, %v1491, %v1223
      %v1525 = vsel %vm1497, %v1492, %v1225
      %v1526 = vsel %vm1497, %v1493, %v1227
      %v1527 = vsel %vm1497, %v1494, %v1229
      %v1528 = vsel %vm1497, %v1495, %v1231
      %v1529 = vsel %vm1497, %v1496, %v1233
      %vm1530 = vcmask 293888
      %v1531 = vsel %vm1530, %v1498, 0.0
      %v1532 = vsel %vm1530, %v1499, 0.0
      %v1533 = vsel %vm1530, %v1500, 0.0
      %v1534 = vsel %vm1530, %v1501, 0.0
      %v1535 = vsel %vm1530, %v1502, 0.0
      %v1536 = vsel %vm1530, %v1503, 0.0
      %v1537 = vsel %vm1530, %v1504, 0.0
      %v1538 = vsel %vm1530, %v1505, 0.0
      %v1539 = vsel %vm1530, %v1506, 0.0
      %v1540 = vsel %vm1530, %v1507, 0.0
      %v1541 = vsel %vm1530, %v1508, 0.0
      %v1542 = vsel %vm1530, %v1509, 0.0
      %v1543 = vsel %vm1530, %v1510, 0.0
      %v1544 = vsel %vm1530, %v1511, 0.0
      %v1545 = vsel %vm1530, %v1512, 0.0
      %v1546 = vsel %vm1530, %v1513, 0.0
      %v1547 = vsel %vm1530, %v1514, 0.0
      %v1548 = vsel %vm1530, %v1515, 0.0
      %v1549 = vsel %vm1530, %v1516, 0.0
      %v1550 = vsel %vm1530, %v1517, 0.0
      %v1551 = vsel %vm1530, %v1518, 0.0
      %v1552 = vsel %vm1530, %v1519, 0.0
      %v1553 = vsel %vm1530, %v1520, 0.0
      %v1554 = vsel %vm1530, %v1521, 0.0
      %v1555 = vsel %vm1530, %v1522, 0.0
      %v1556 = vsel %vm1530, %v1523, 0.0
      %v1557 = vsel %vm1530, %v1524, 0.0
      %v1558 = vsel %vm1530, %v1525, 0.0
      %v1559 = vsel %vm1530, %v1526, 0.0
      %v1560 = vsel %vm1530, %v1527, 0.0
      %v1561 = vsel %vm1530, %v1528, 0.0
      %v1562 = vsel %vm1530, %v1529, 0.0
      %v1563 = vld [vmem:[%s1] sm:$0xff]
      %v1564 = vld [vmem:[%s1 + $0x8] sm:$0xff]
      %v1565 = vld [vmem:[%s1 + $0x10] sm:$0xff]
      %v1566 = vld [vmem:[%s1 + $0x18] sm:$0xff]
      %v1567 = vld [vmem:[%s1 + $0x20] sm:$0xff]
      %v1568 = vld [vmem:[%s1 + $0x28] sm:$0xff]
      %v1569 = vld [vmem:[%s1 + $0x30] sm:$0xff]
      %v1570 = vld [vmem:[%s1 + $0x38] sm:$0xff]
      %v1571 = vld [vmem:[%s1 + $0x40] sm:$0xff]
      %v1572 = vld [vmem:[%s1 + $0x48] sm:$0xff]
      %v1573 = vld [vmem:[%s1 + $0x50] sm:$0xff]
      %v1574 = vld [vmem:[%s1 + $0x58] sm:$0xff]
      %v1575 = vld [vmem:[%s1 + $0x60] sm:$0xff]
      %v1576 = vld [vmem:[%s1 + $0x68] sm:$0xff]
      %v1577 = vld [vmem:[%s1 + $0x70] sm:$0xff]
      %v1578 = vld [vmem:[%s1 + $0x78] sm:$0xff]
      %1579 = vmatprep.subr.mxu0 0.0
      %1580 = vmatpush1.msra.mxu0 %v1563
      %1581 = vmatprep.subr.mxu0 0.0
      %1582 = vmatpush1.msra.mxu0 %v1564
      %1583 = vmatprep.subr.mxu0 0.0
      %1584 = vmatpush1.msra.mxu0 %v1565
      %1585 = vmatprep.subr.mxu0 0.0
      %1586 = vmatpush1.msra.mxu0 %v1566
      %1587 = vmatprep.subr.mxu0 0.0
      %1588 = vmatpush1.msra.mxu0 %v1567
      %1589 = vmatprep.subr.mxu0 0.0
      %1590 = vmatpush1.msra.mxu0 %v1568
      %1591 = vmatprep.subr.mxu0 0.0
      %1592 = vmatpush1.msra.mxu0 %v1569
      %1593 = vmatprep.subr.mxu0 0.0
      %1594 = vmatpush1.msra.mxu0 %v1570
      %1595 = vmatprep.subr.mxu0 0.0
      %1596 = vmatpush1.msra.mxu0 %v1571
      %1597 = vmatprep.subr.mxu0 0.0
      %1598 = vmatpush1.msra.mxu0 %v1572
      %1599 = vmatprep.subr.mxu0 0.0
      %1600 = vmatpush1.msra.mxu0 %v1573
      %1601 = vmatprep.subr.mxu0 0.0
      %1602 = vmatpush1.msra.mxu0 %v1574
      %1603 = vmatprep.subr.mxu0 0.0
      %1604 = vmatpush1.msra.mxu0 %v1575
      %1605 = vmatprep.subr.mxu0 0.0
      %1606 = vmatpush1.msra.mxu0 %v1576
      %1607 = vmatprep.subr.mxu0 0.0
      %1608 = vmatpush1.msra.mxu0 %v1577
      %1609 = vmatprep.subr.mxu0 0.0
      %1610 = vmatpush1.msra.mxu0 %v1578
      %1611 = vmatprep.subr.mxu0 0.0
      %1612 = vmatpush1.msra.mxu0 0.0
      %1613 = vmatprep.subr.mxu0 0.0
      %1614 = vmatpush1.msra.mxu0 0.0
      %1615 = vmatprep.subr.mxu0 0.0
      %1616 = vmatpush1.msra.mxu0 0.0
      %1617 = vmatprep.subr.mxu0 0.0
      %1618 = vmatpush1.msra.mxu0 0.0
      %1619 = vmatprep.subr.mxu0 0.0
      %1620 = vmatpush1.msra.mxu0 0.0
      %1621 = vmatprep.subr.mxu0 0.0
      %1622 = vmatpush1.msra.mxu0 0.0
      %1623 = vmatprep.subr.mxu0 0.0
      %1624 = vmatpush1.msra.mxu0 0.0
      %1625 = vmatprep.subr.mxu0 0.0
      %1626 = vmatpush1.msra.mxu0 0.0
      %1627 = vmatprep.subr.mxu0 0.0
      %1628 = vmatpush1.msra.mxu0 0.0
      %1629 = vmatprep.subr.mxu0 0.0
      %1630 = vmatpush1.msra.mxu0 0.0
      %1631 = vmatprep.subr.mxu0 0.0
      %1632 = vmatpush1.msra.mxu0 0.0
      %1633 = vmatprep.subr.mxu0 0.0
      %1634 = vmatpush1.msra.mxu0 0.0
      %1635 = vmatprep.subr.mxu0 0.0
      %1636 = vmatpush1.msra.mxu0 0.0
      %1637 = vmatprep.subr.mxu0 0.0
      %1638 = vmatpush1.msra.mxu0 0.0
      %1639 = vmatprep.subr.mxu0 0.0
      %1640 = vmatpush1.msra.mxu0 0.0
      %1641 = vmatprep.subr.mxu0 0.0
      %1642 = vmatpush1.msra.mxu0 0.0
      %1643 = vmatprep.mubr.f32.mxu0 0.0
      %1644 = vmatmul.mubr.f32.gmra.mrb[0].mxu0 %v1531
      %v1645 = vpop.f32.mrb[0].mxu0
      %v1646 = vadd.f32 0.0, %v1645
      %v1647 = vpop.f32.mrb[0].mxu0
      %1648 = vmatprep.mubr.f32.mxu0 0.0
      %1649 = vmatmul.mubr.f32.gmra.mrb[0].mxu0 %v1532
      %v1650 = vpop.f32.mrb[0].mxu0
      %v1651 = vadd.f32 0.0, %v1650
      %v1652 = vpop.f32.mrb[0].mxu0
      %1653 = vmatprep.mubr.f32.mxu0 0.0
      %1654 = vmatmul.mubr.f32.gmra.mrb[0].mxu0 %v1533
      %v1655 = vpop.f32.mrb[0].mxu0
      %v1656 = vadd.f32 0.0, %v1655
      %v1657 = vpop.f32.mrb[0].mxu0
      %1658 = vmatprep.mubr.f32.mxu0 0.0
      %1659 = vmatmul.mubr.f32.gmra.mrb[0].mxu0 %v1534
      %v1660 = vpop.f32.mrb[0].mxu0
      %v1661 = vadd.f32 0.0, %v1660
      %v1662 = vpop.f32.mrb[0].mxu0
      %1663 = vmatprep.mubr.f32.mxu0 0.0
      %1664 = vmatmul.mubr.f32.gmra.mrb[0].mxu0 %v1535
      %v1665 = vpop.f32.mrb[0].mxu0
      %v1666 = vadd.f32 0.0, %v1665
      %v1667 = vpop.f32.mrb[0].mxu0
      %1668 = vmatprep.mubr.f32.mxu0 0.0
      %1669 = vmatmul.mubr.f32.gmra.mrb[0].mxu0 %v1536
      %v1670 = vpop.f32.mrb[0].mxu0
      %v1671 = vadd.f32 0.0, %v1670
      %v1672 = vpop.f32.mrb[0].mxu0
      %1673 = vmatprep.mubr.f32.mxu0 0.0
      %1674 = vmatmul.mubr.f32.gmra.mrb[0].mxu0 %v1537
      %v1675 = vpop.f32.mrb[0].mxu0
      %v1676 = vadd.f32 0.0, %v1675
      %v1677 = vpop.f32.mrb[0].mxu0
      %1678 = vmatprep.mubr.f32.mxu0 0.0
      %1679 = vmatmul.mubr.f32.gmra.mrb[0].mxu0 %v1538
      %v1680 = vpop.f32.mrb[0].mxu0
      %v1681 = vadd.f32 0.0, %v1680
      %v1682 = vpop.f32.mrb[0].mxu0
      %1683 = vmatprep.mubr.f32.mxu0 0.0
      %1684 = vmatmul.mubr.f32.gmra.mrb[0].mxu0 %v1539
      %v1685 = vpop.f32.mrb[0].mxu0
      %v1686 = vadd.f32 0.0, %v1685
      %v1687 = vpop.f32.mrb[0].mxu0
      %1688 = vmatprep.mubr.f32.mxu0 0.0
      %1689 = vmatmul.mubr.f32.gmra.mrb[0].mxu0 %v1540
      %v1690 = vpop.f32.mrb[0].mxu0
      %v1691 = vadd.f32 0.0, %v1690
      %v1692 = vpop.f32.mrb[0].mxu0
      %1693 = vmatprep.mubr.f32.mxu0 0.0
      %1694 = vmatmul.mubr.f32.gmra.mrb[0].mxu0 %v1541
      %v1695 = vpop.f32.mrb[0].mxu0
      %v1696 = vadd.f32 0.0, %v1695
      %v1697 = vpop.f32.mrb[0].mxu0
      %1698 = vmatprep.mubr.f32.mxu0 0.0
      %1699 = vmatmul.mubr.f32.gmra.mrb[0].mxu0 %v1542
      %v1700 = vpop.f32.mrb[0].mxu0
      %v1701 = vadd.f32 0.0, %v1700
      %v1702 = vpop.f32.mrb[0].mxu0
      %1703 = vmatprep.mubr.f32.mxu0 0.0
      %1704 = vmatmul.mubr.f32.gmra.mrb[0].mxu0 %v1543
      %v1705 = vpop.f32.mrb[0].mxu0
      %v1706 = vadd.f32 0.0, %v1705
      %v1707 = vpop.f32.mrb[0].mxu0
      %1708 = vmatprep.mubr.f32.mxu0 0.0
      %1709 = vmatmul.mubr.f32.gmra.mrb[0].mxu0 %v1544
      %v1710 = vpop.f32.mrb[0].mxu0
      %v1711 = vadd.f32 0.0, %v1710
      %v1712 = vpop.f32.mrb[0].mxu0
      %1713 = vmatprep.mubr.f32.mxu0 0.0
      %1714 = vmatmul.mubr.f32.gmra.mrb[0].mxu0 %v1545
      %v1715 = vpop.f32.mrb[0].mxu0
      %v1716 = vadd.f32 0.0, %v1715
      %v1717 = vpop.f32.mrb[0].mxu0
      %1718 = vmatprep.mubr.f32.mxu0 0.0
      %1719 = vmatmul.mubr.f32.gmra.mrb[0].mxu0 %v1546
      %v1720 = vpop.f32.mrb[0].mxu0
      %v1721 = vadd.f32 0.0, %v1720
      %v1722 = vpop.f32.mrb[0].mxu0
      %1723 = vmatprep.mubr.f32.mxu0 0.0
      %1724 = vmatmul.mubr.f32.gmra.mrb[0].mxu0 %v1547
      %v1725 = vpop.f32.mrb[0].mxu0
      %v1726 = vadd.f32 0.0, %v1725
      %v1727 = vpop.f32.mrb[0].mxu0
      %1728 = vmatprep.mubr.f32.mxu0 0.0
      %1729 = vmatmul.mubr.f32.gmra.mrb[0].mxu0 %v1548
      %v1730 = vpop.f32.mrb[0].mxu0
      %v1731 = vadd.f32 0.0, %v1730
      %v1732 = vpop.f32.mrb[0].mxu0
      %1733 = vmatprep.mubr.f32.mxu0 0.0
      %1734 = vmatmul.mubr.f32.gmra.mrb[0].mxu0 %v1549
      %v1735 = vpop.f32.mrb[0].mxu0
      %v1736 = vadd.f32 0.0, %v1735
      %v1737 = vpop.f32.mrb[0].mxu0
      %1738 = vmatprep.mubr.f32.mxu0 0.0
      %1739 = vmatmul.mubr.f32.gmra.mrb[0].mxu0 %v1550
      %v1740 = vpop.f32.mrb[0].mxu0
      %v1741 = vadd.f32 0.0, %v1740
      %v1742 = vpop.f32.mrb[0].mxu0
      %1743 = vmatprep.mubr.f32.mxu0 0.0
      %1744 = vmatmul.mubr.f32.gmra.mrb[0].mxu0 %v1551
      %v1745 = vpop.f32.mrb[0].mxu0
      %v1746 = vadd.f32 0.0, %v1745
      %v1747 = vpop.f32.mrb[0].mxu0
      %1748 = vmatprep.mubr.f32.mxu0 0.0
      %1749 = vmatmul.mubr.f32.gmra.mrb[0].mxu0 %v1552
      %v1750 = vpop.f32.mrb[0].mxu0
      %v1751 = vadd.f32 0.0, %v1750
      %v1752 = vpop.f32.mrb[0].mxu0
      %1753 = vmatprep.mubr.f32.mxu0 0.0
      %1754 = vmatmul.mubr.f32.gmra.mrb[0].mxu0 %v1553
      %v1755 = vpop.f32.mrb[0].mxu0
      %v1756 = vadd.f32 0.0, %v1755
      %v1757 = vpop.f32.mrb[0].mxu0
      %1758 = vmatprep.mubr.f32.mxu0 0.0
      %1759 = vmatmul.mubr.f32.gmra.mrb[0].mxu0 %v1554
      %v1760 = vpop.f32.mrb[0].mxu0
      %v1761 = vadd.f32 0.0, %v1760
      %v1762 = vpop.f32.mrb[0].mxu0
      %1763 = vmatprep.mubr.f32.mxu0 0.0
      %1764 = vmatmul.mubr.f32.gmra.mrb[0].mxu0 %v1555
      %v1765 = vpop.f32.mrb[0].mxu0
      %v1766 = vadd.f32 0.0, %v1765
      %v1767 = vpop.f32.mrb[0].mxu0
      %1768 = vmatprep.mubr.f32.mxu0 0.0
      %1769 = vmatmul.mubr.f32.gmra.mrb[0].mxu0 %v1556
      %v1770 = vpop.f32.mrb[0].mxu0
      %v1771 = vadd.f32 0.0, %v1770
      %v1772 = vpop.f32.mrb[0].mxu0
      %1773 = vmatprep.mubr.f32.mxu0 0.0
      %1774 = vmatmul.mubr.f32.gmra.mrb[0].mxu0 %v1557
      %v1775 = vpop.f32.mrb[0].mxu0
      %v1776 = vadd.f32 0.0, %v1775
      %v1777 = vpop.f32.mrb[0].mxu0
      %1778 = vmatprep.mubr.f32.mxu0 0.0
      %1779 = vmatmul.mubr.f32.gmra.mrb[0].mxu0 %v1558
      %v1780 = vpop.f32.mrb[0].mxu0
      %v1781 = vadd.f32 0.0, %v1780
      %v1782 = vpop.f32.mrb[0].mxu0
      %1783 = vmatprep.mubr.f32.mxu0 0.0
      %1784 = vmatmul.mubr.f32.gmra.mrb[0].mxu0 %v1559
      %v1785 = vpop.f32.mrb[0].mxu0
      %v1786 = vadd.f32 0.0, %v1785
      %v1787 = vpop.f32.mrb[0].mxu0
      %1788 = vmatprep.mubr.f32.mxu0 0.0
      %1789 = vmatmul.mubr.f32.gmra.mrb[0].mxu0 %v1560
      %v1790 = vpop.f32.mrb[0].mxu0
      %v1791 = vadd.f32 0.0, %v1790
      %v1792 = vpop.f32.mrb[0].mxu0
      %1793 = vmatprep.mubr.f32.mxu0 0.0
      %1794 = vmatmul.mubr.f32.gmra.mrb[0].mxu0 %v1561
      %v1795 = vpop.f32.mrb[0].mxu0
      %v1796 = vadd.f32 0.0, %v1795
      %v1797 = vpop.f32.mrb[0].mxu0
      %1798 = vmatprep.mubr.f32.mxu0 0.0
      %1799 = vmatmul.mubr.f32.gmra.mrb[0].mxu0 %v1562
      %v1800 = vpop.f32.mrb[0].mxu0
      %v1801 = vadd.f32 0.0, %v1800
      %v1802 = vpop.f32.mrb[0].mxu0
      %1803 = vdwg.mxu0
      %1804 = vst [vmem:[%s196] sm:$0xff] %v1646
      %1805 = vst [vmem:[%s196 + $0x8] sm:$0xff] %v1651
      %1806 = vst [vmem:[%s196 + $0x10] sm:$0xff] %v1656
      %1807 = vst [vmem:[%s196 + $0x18] sm:$0xff] %v1661
      %1808 = vst [vmem:[%s196 + $0x20] sm:$0xff] %v1666
      %1809 = vst [vmem:[%s196 + $0x28] sm:$0xff] %v1671
      %1810 = vst [vmem:[%s196 + $0x30] sm:$0xff] %v1676
      %1811 = vst [vmem:[%s196 + $0x38] sm:$0xff] %v1681
      %1812 = vst [vmem:[%s196 + $0x40] sm:$0xff] %v1686
      %1813 = vst [vmem:[%s196 + $0x48] sm:$0xff] %v1691
      %1814 = vst [vmem:[%s196 + $0x50] sm:$0xff] %v1696
      %1815 = vst [vmem:[%s196 + $0x58] sm:$0xff] %v1701
      %1816 = vst [vmem:[%s196 + $0x60] sm:$0xff] %v1706
      %1817 = vst [vmem:[%s196 + $0x68] sm:$0xff] %v1711
      %1818 = vst [vmem:[%s196 + $0x70] sm:$0xff] %v1716
      %1819 = vst [vmem:[%s196 + $0x78] sm:$0xff] %v1721
      %1820 = vst [vmem:[%s196 + $0x80] sm:$0xff] %v1726
      %1821 = vst [vmem:[%s196 + $0x88] sm:$0xff] %v1731
      %1822 = vst [vmem:[%s196 + $0x90] sm:$0xff] %v1736
      %1823 = vst [vmem:[%s196 + $0x98] sm:$0xff] %v1741
      %1824 = vst [vmem:[%s196 + $0xa0] sm:$0xff] %v1746
      %1825 = vst [vmem:[%s196 + $0xa8] sm:$0xff] %v1751
      %1826 = vst [vmem:[%s196 + $0xb0] sm:$0xff] %v1756
      %1827 = vst [vmem:[%s196 + $0xb8] sm:$0xff] %v1761
      %1828 = vst [vmem:[%s196 + $0xc0] sm:$0xff] %v1766
      %1829 = vst [vmem:[%s196 + $0xc8] sm:$0xff] %v1771
      %1830 = vst [vmem:[%s196 + $0xd0] sm:$0xff] %v1776
      %1831 = vst [vmem:[%s196 + $0xd8] sm:$0xff] %v1781
      %1832 = vst [vmem:[%s196 + $0xe0] sm:$0xff] %v1786
      %1833 = vst [vmem:[%s196 + $0xe8] sm:$0xff] %v1791
      %1834 = vst [vmem:[%s196 + $0xf0] sm:$0xff] %v1796
      %1835 = vst [vmem:[%s196 + $0xf8] sm:$0xff] %v1801
      %v1836 = vadd.f32 %v1646, %v1651
      %v1837 = vadd.f32 %v1836, %v1656
      %v1838 = vadd.f32 %v1837, %v1661
      %v1839 = vadd.f32 %v1838, %v1666
      %v1840 = vadd.f32 %v1839, %v1671
      %v1841 = vadd.f32 %v1840, %v1676
      %v1842 = vadd.f32 %v1841, %v1681
      %v1843 = vadd.f32 %v1842, %v1686
      %v1844 = vadd.f32 %v1843, %v1691
      %v1845 = vadd.f32 %v1844, %v1696
      %v1846 = vadd.f32 %v1845, %v1701
      %v1847 = vadd.f32 %v1846, %v1706
      %v1848 = vadd.f32 %v1847, %v1711
      %v1849 = vadd.f32 %v1848, %v1716
      %v1850 = vadd.f32 %v1849, %v1721
      %v1851 = vadd.f32 %v1850, %v1726
      %v1852 = vadd.f32 %v1851, %v1731
      %v1853 = vadd.f32 %v1852, %v1736
      %v1854 = vadd.f32 %v1853, %v1741
      %v1855 = vadd.f32 %v1854, %v1746
      %v1856 = vadd.f32 %v1855, %v1751
      %v1857 = vadd.f32 %v1856, %v1756
      %v1858 = vadd.f32 %v1857, %v1761
      %v1859 = vadd.f32 %v1858, %v1766
      %v1860 = vadd.f32 %v1859, %v1771
      %v1861 = vadd.f32 %v1860, %v1776
      %v1862 = vadd.f32 %v1861, %v1781
      %v1863 = vadd.f32 %v1862, %v1786
      %v1864 = vadd.f32 %v1863, %v1791
      %v1865 = vadd.f32 %v1864, %v1796
      %v1866 = vadd.f32 %v1865, %v1801
      %v1867 = vrot.slane %v1866, 4
      %v1868 = vadd.f32 %v1866, %v1867
      %v1869 = vrot.slane %v1868, 2
      %v1870 = vadd.f32 %v1868, %v1869
      %v1871 = vrot.slane %v1870, 1
      %v1872 = vadd.f32 %v1870, %v1871
      %v1873 = vmul.f32 %v1646, %v1646
      %v1874 = vmul.f32 %v1651, %v1651
      %v1875 = vmul.f32 %v1656, %v1656
      %v1876 = vmul.f32 %v1661, %v1661
      %v1877 = vmul.f32 %v1666, %v1666
      %v1878 = vmul.f32 %v1671, %v1671
      %v1879 = vmul.f32 %v1676, %v1676
      %v1880 = vmul.f32 %v1681, %v1681
      %v1881 = vmul.f32 %v1686, %v1686
      %v1882 = vmul.f32 %v1691, %v1691
      %v1883 = vmul.f32 %v1696, %v1696
      %v1884 = vmul.f32 %v1701, %v1701
      %v1885 = vmul.f32 %v1706, %v1706
      %v1886 = vmul.f32 %v1711, %v1711
      %v1887 = vmul.f32 %v1716, %v1716
      %v1888 = vmul.f32 %v1721, %v1721
      %v1889 = vmul.f32 %v1726, %v1726
      %v1890 = vmul.f32 %v1731, %v1731
      %v1891 = vmul.f32 %v1736, %v1736
      %v1892 = vmul.f32 %v1741, %v1741
      %v1893 = vmul.f32 %v1746, %v1746
      %v1894 = vmul.f32 %v1751, %v1751
      %v1895 = vmul.f32 %v1756, %v1756
      %v1896 = vmul.f32 %v1761, %v1761
      %v1897 = vmul.f32 %v1766, %v1766
      %v1898 = vmul.f32 %v1771, %v1771
      %v1899 = vmul.f32 %v1776, %v1776
      %v1900 = vmul.f32 %v1781, %v1781
      %v1901 = vmul.f32 %v1786, %v1786
      %v1902 = vmul.f32 %v1791, %v1791
      %v1903 = vmul.f32 %v1796, %v1796
      %v1904 = vmul.f32 %v1801, %v1801
      %v1905 = vadd.f32 %v1873, %v1874
      %v1906 = vadd.f32 %v1905, %v1875
      %v1907 = vadd.f32 %v1906, %v1876
      %v1908 = vadd.f32 %v1907, %v1877
      %v1909 = vadd.f32 %v1908, %v1878
      %v1910 = vadd.f32 %v1909, %v1879
      %v1911 = vadd.f32 %v1910, %v1880
      %v1912 = vadd.f32 %v1911, %v1881
      %v1913 = vadd.f32 %v1912, %v1882
      %v1914 = vadd.f32 %v1913, %v1883
      %v1915 = vadd.f32 %v1914, %v1884
      %v1916 = vadd.f32 %v1915, %v1885
      %v1917 = vadd.f32 %v1916, %v1886
      %v1918 = vadd.f32 %v1917, %v1887
      %v1919 = vadd.f32 %v1918, %v1888
      %v1920 = vadd.f32 %v1919, %v1889
      %v1921 = vadd.f32 %v1920, %v1890
      %v1922 = vadd.f32 %v1921, %v1891
      %v1923 = vadd.f32 %v1922, %v1892
      %v1924 = vadd.f32 %v1923, %v1893
      %v1925 = vadd.f32 %v1924, %v1894
      %v1926 = vadd.f32 %v1925, %v1895
      %v1927 = vadd.f32 %v1926, %v1896
      %v1928 = vadd.f32 %v1927, %v1897
      %v1929 = vadd.f32 %v1928, %v1898
      %v1930 = vadd.f32 %v1929, %v1899
      %v1931 = vadd.f32 %v1930, %v1900
      %v1932 = vadd.f32 %v1931, %v1901
      %v1933 = vadd.f32 %v1932, %v1902
      %v1934 = vadd.f32 %v1933, %v1903
      %v1935 = vadd.f32 %v1934, %v1904
      %v1936 = vrot.slane %v1935, 4
      %v1937 = vadd.f32 %v1935, %v1936
      %v1938 = vrot.slane %v1937, 2
      %v1939 = vadd.f32 %v1937, %v1938
      %v1940 = vrot.slane %v1939, 1
      %v1941 = vadd.f32 %v1939, %v1940
      %vm1942 = vcmask 1040384
      %v1943 = vsel %vm1942, %v1872, %v1941
      %1944 = vst [vmem:[%s203] sm:$0x3] %v1943
      %s1945 = sadd.s32 %s19, %s20
      %s1946 = smul.u32 32, %s1945
      %p1947 = scmp.lt.s32.totalorder %s1946, 63
      %s1948 = scalar_select %p1947, %s1946, 63
      %s1949 = smul.addr %s1948, 8
      %s1950 = scalar_lea.vmem %s2, %s1949
      %s1951 = sadd.s32 %s19, %s20
      %p1952 = scmp.lt.s32.totalorder %s1951, 1
      %s1953 = scalar_select %p1952, %s1951, 1
      %s1954 = smul.addr %s1953, 2
      %s1955 = scalar_lea.vmem %s3, %s1954
      // Predicated region
      $region29: #{conv_bn_relu_pallas.2} parent=27 // pred_check
        %p1956 = pneg %p94
      $region30: #{conv_bn_relu_pallas.2} parent=27 // pred_check_branch
        %1958 = sbr.rel (%p1956) target = $region32
      $region31: #{conv_bn_relu_pallas.2} parent=27 // pred_region
        %s1959 = sadd.s32 %s19, %s20
        %s1960 = smul.u32 32, %s1959
      $region32: #{conv_bn_relu_pallas.2} parent=27 // pred_fallthru
        _
      // Predicated region
      $region33: #{conv_bn_relu_pallas.2} parent=27 // pred_check
        %p1961 = pneg %p122
      $region34: #{conv_bn_relu_pallas.2} parent=27 // pred_check_branch
        %1963 = sbr.rel (%p1961) target = $region36
      $region35: #{conv_bn_relu_pallas.2} parent=27 // pred_region
        %s1964 = sadd.s32 %s19, %s20
      $region36: #{conv_bn_relu_pallas.2} parent=27 // pred_fallthru
        _
    $region28: #{conv_bn_relu_pallas.2} parent=5 // pred_fallthru
      _
    %p1965 = scmp.le.s32.totalorder 2, %s10
    // Predicated region
    $region37: #{conv_bn_relu_pallas.2} parent=5 // pred_check
      %p1966 = pneg %p1965
    $region38: #{conv_bn_relu_pallas.2} parent=5 // pred_check_branch
      %1968 = sbr.rel (%p1966) target = $region40
    $region39: #{conv_bn_relu_pallas.2} parent=5 // pred_region
      %s1969 = ssub.s32 %s10, 2
      // Predicated region
      $region41: #{conv_bn_relu_pallas.2} parent=39 // pred_check
        %p1970 = pneg %p100
      $region42: #{conv_bn_relu_pallas.2} parent=39 // pred_check_branch
        %1972 = sbr.rel (%p1970) target = $region44
      $region43: #{conv_bn_relu_pallas.2} parent=39 // pred_region
        %s1973 = sadd.s32 %s21, %s22
        %s1974 = smul.u32 32, %s1973
        %p1975 = scmp.lt.s32.totalorder %s1974, 63
        %s1976 = scalar_select %p1975, %s1974, 63
        %s1977 = smul.addr %s1976, 8
        %s1978 = scalar_lea.vmem %s2, %s1977
      $region44: #{conv_bn_relu_pallas.2} parent=39 // pred_fallthru
        _
      // Predicated region
      $region45: #{conv_bn_relu_pallas.2} parent=39 // pred_check
        %p1979 = pneg %p128
      $region46: #{conv_bn_relu_pallas.2} parent=39 // pred_check_branch
        %1981 = sbr.rel (%p1979) target = $region48
      $region47: #{conv_bn_relu_pallas.2} parent=39 // pred_region
        %s1982 = sadd.s32 %s21, %s22
        %p1983 = scmp.lt.s32.totalorder %s1982, 1
        %s1984 = scalar_select %p1983, %s1982, 1
        %s1985 = smul.addr %s1984, 2
        %s1986 = scalar_lea.vmem %s3, %s1985
      $region48: #{conv_bn_relu_pallas.2} parent=39 // pred_fallthru
        _
    $region40: #{conv_bn_relu_pallas.2} parent=5 // pred_fallthru
      _
  $region6: #{conv_bn_relu_pallas.2} parent=0 // loop_footer
    %s14 = sadd.s32 1, %s10
  $region7: #{conv_bn_relu_pallas.2} parent=0 // loop_footer_branch
    %9 = sbr.rel target = $region3
  $region8: #{conv_bn_relu_pallas.2} parent=0 // loop_exit
    _

</llo_original>
